<compile_context>
chip_gen: v7x
topology: tpu7x:2x2x1
jax: 0.10.0
libtpu: 0.0.40
codegen_flags: <defaults>
</compile_context>

<pallas_src>
import functools

import jax
import jax.numpy as jnp
from jax.experimental import pallas as pl
from jax.experimental.pallas import tpu as pltpu


def _round_up(x, m):
    return (x + m - 1) // m * m


def _lstm_recurrence_kernel(len_ref, gin_ref, whh_ref, h_out_ref, c_sc,
                            *, tt, hp):
    """Serial LSTM recurrence over one block of TT timesteps.

    len_ref   : (BT, 1)        int32  lengths (padded batch rows have length 0)
    gin_ref   : (TT, BT, 4Hp)  bf16   precomputed x @ W_ih^T + b for this block
    whh_ref   : (Hp, 4Hp)      bf16   hidden->gates weights (gate-padded, transposed)
    h_out_ref : (BT, Hp)       f32    running hidden state; holds h_final at the end
    c_sc      : (BT, Hp)       f32    VMEM scratch carrying the cell state
    """
    s = pl.program_id(1)          # time-block index (serial / "arbitrary" axis)

    @pl.when(s == 0)
    def _():
        h_out_ref[...] = jnp.zeros_like(h_out_ref)
        c_sc[...] = jnp.zeros_like(c_sc)

    lengths = len_ref[...]        # (BT, 1) int32
    whh = whh_ref[...]            # (Hp, 4Hp) bf16, resident across the grid
    t0 = s * tt

    def step(i, carry):
        h, c = carry                                           # (BT, Hp) f32
        g_in = gin_ref[i].astype(jnp.float32)                  # (BT, 4Hp)
        gates = g_in + jnp.dot(h.astype(jnp.bfloat16), whh,
                               preferred_element_type=jnp.float32)
        # Gate order matches PyTorch nn.LSTM: [i, f, g, o]; hp is a multiple
        # of 128 so every slice is lane-aligned (whole vreg lane groups).
        i_g = jax.nn.sigmoid(gates[:, 0 * hp:1 * hp])
        f_g = jax.nn.sigmoid(gates[:, 1 * hp:2 * hp])
        g_g = jnp.tanh(gates[:, 2 * hp:3 * hp])
        o_g = jax.nn.sigmoid(gates[:, 3 * hp:4 * hp])
        c_new = f_g * c + i_g * g_g
        h_new = o_g * jnp.tanh(c_new)
        # pack_padded_sequence semantics: freeze state once t >= length[b].
        valid = (t0 + i) < lengths                             # (BT, 1) bool
        return jnp.where(valid, h_new, h), jnp.where(valid, c_new, c)

    h, c = jax.lax.fori_loop(0, tt, step, (h_out_ref[...], c_sc[...]),
                             unroll=True)
    h_out_ref[...] = h
    c_sc[...] = c


def text_lstm_forward(tokens, lengths, params, *, time_block=16):
    """tokens: (B, T) int32, lengths: (B,) int32 -> logits (B, num_classes)."""
    emb_table = params["embedding"]            # (V, E)
    w_ih = params["w_ih"]                      # (4H, E)  PyTorch layout [i;f;g;o]
    w_hh = params["w_hh"]                      # (4H, H)
    b = params["b_ih"] + params["b_hh"]        # (4H,)
    w_fc = params["w_fc"]                      # (C, H)
    b_fc = params["b_fc"]                      # (C,)

    B, T = tokens.shape
    H = w_hh.shape[1]

    # --- lane/sublane friendly padded sizes --------------------------------
    Hp = _round_up(H, 128)                     # gate boundaries lane-aligned
    Bp = _round_up(B, 8)
    if Bp > 128:
        Bp = _round_up(B, 128)
    BT = min(Bp, 128)                          # batch tile ("parallel" grid axis)
    TT = max(1, min(time_block, T))            # timesteps per grid step
    Tp = _round_up(T, TT)

    # --- gate-padded parameters (zeros in the padded hidden slots) ---------
    def pad_gate_rows(w):                      # (4H, ...) -> (4Hp, ...)
        w4 = w.reshape(4, H, *w.shape[1:])
        pad = [(0, 0)] * w4.ndim
        pad[1] = (0, Hp - H)
        return jnp.pad(w4, pad).reshape(4 * Hp, *w.shape[1:])

    wih_p = pad_gate_rows(w_ih)                                    # (4Hp, E)
    whh_p = jnp.pad(pad_gate_rows(w_hh), ((0, 0), (0, Hp - H)))    # (4Hp, Hp)
    b_p = pad_gate_rows(b.reshape(4 * H, 1)).reshape(4 * Hp)       # (4Hp,)

    # --- input projection hoisted out of the recurrence (one big matmul) ---
    x = emb_table[tokens].astype(jnp.bfloat16)                     # (B, T, E)
    gin = jnp.einsum("bte,ge->btg", x, wih_p.astype(jnp.bfloat16),
                     preferred_element_type=jnp.float32)
    gin = gin + b_p.astype(jnp.float32)
    gin = jnp.transpose(gin, (1, 0, 2))                            # (T, B, 4Hp)
    gin = jnp.pad(gin, ((0, Tp - T), (0, Bp - B), (0, 0)))
    gin = gin.astype(jnp.bfloat16)                                 # (Tp, Bp, 4Hp)

    whh_t = jnp.transpose(whh_p).astype(jnp.bfloat16)              # (Hp, 4Hp)
    len_col = jnp.pad(lengths.astype(jnp.int32), (0, Bp - B)).reshape(Bp, 1)

    kernel = functools.partial(_lstm_recurrence_kernel, tt=TT, hp=Hp)

    # VMEM footprint is tiny here (double-buffered gates block + resident
    # weights + state ~ a few hundred KiB), well under every generation's
    # scoped default, so no explicit vmem_limit_bytes is needed.
    h_final = pl.pallas_call(
        kernel,
        out_shape=jax.ShapeDtypeStruct((Bp, Hp), jnp.float32),
        grid_spec=pltpu.PrefetchScalarGridSpec(
            num_scalar_prefetch=0,
            grid=(Bp // BT, Tp // TT),
            in_specs=[
                pl.BlockSpec((BT, 1), lambda bi, s: (bi, 0)),            # lengths
                pl.BlockSpec((TT, BT, 4 * Hp), lambda bi, s: (s, bi, 0)),  # gates_in
                pl.BlockSpec((Hp, 4 * Hp), lambda bi, s: (0, 0)),        # W_hh^T
            ],
            out_specs=pl.BlockSpec((BT, Hp), lambda bi, s: (bi, 0)),     # h state
            scratch_shapes=[pltpu.VMEM((BT, Hp), jnp.float32)],          # c state
        ),
        compiler_params=pltpu.CompilerParams(
            dimension_semantics=("parallel", "arbitrary")),
    )(len_col, gin, whh_t)

    # --- final FC outside the recurrent kernel (lane-sparse num_classes) ---
    h = h_final[:B, :H]
    # Dropout: eval-mode identity.
    return h @ w_fc.T.astype(jnp.float32) + b_fc


def _reference_forward(tokens, lengths, params):
    """Pure-JAX f32 reference (mirrors PyTorch TextLSTM in eval mode)."""
    emb = params["embedding"][tokens].astype(jnp.float32)   # (B, T, E)
    B, T, _ = emb.shape
    H = params["w_hh"].shape[1]
    w_ih_t = params["w_ih"].T
    w_hh_t = params["w_hh"].T
    b = params["b_ih"] + params["b_hh"]

    def step(carry, xt_and_t):
        h, c = carry
        x_t, t = xt_and_t
        gates = x_t @ w_ih_t + h @ w_hh_t + b
        i_g = jax.nn.sigmoid(gates[:, 0 * H:1 * H])
        f_g = jax.nn.sigmoid(gates[:, 1 * H:2 * H])
        g_g = jnp.tanh(gates[:, 2 * H:3 * H])
        o_g = jax.nn.sigmoid(gates[:, 3 * H:4 * H])
        c_new = f_g * c + i_g * g_g
        h_new = o_g * jnp.tanh(c_new)
        mask = (t < lengths).astype(jnp.float32)[:, None]
        h = mask * h_new + (1.0 - mask) * h
        c = mask * c_new + (1.0 - mask) * c
        return (h, c), None

    h0 = jnp.zeros((B, H), jnp.float32)
    c0 = jnp.zeros((B, H), jnp.float32)
    x_tbe = jnp.transpose(emb, (1, 0, 2))
    (h, _), _ = jax.lax.scan(step, (h0, c0), (x_tbe, jnp.arange(T)))
    return h @ params["w_fc"].T + params["b_fc"]


def init_params(key, vocab_size, embed_dim, hidden_dim, num_classes):
    ks = jax.random.split(key, 7)
    s = 0.1
    return {
        "embedding": s * jax.random.normal(ks[0], (vocab_size, embed_dim), jnp.float32),
        "w_ih": s * jax.random.normal(ks[1], (4 * hidden_dim, embed_dim), jnp.float32),
        "w_hh": s * jax.random.normal(ks[2], (4 * hidden_dim, hidden_dim), jnp.float32),
        "b_ih": s * jax.random.normal(ks[3], (4 * hidden_dim,), jnp.float32),
        "b_hh": s * jax.random.normal(ks[4], (4 * hidden_dim,), jnp.float32),
        "w_fc": s * jax.random.normal(ks[5], (num_classes, hidden_dim), jnp.float32),
        "b_fc": s * jax.random.normal(ks[6], (num_classes,), jnp.float32),
    }


if __name__ == "__main__":
    vocab_size, embed_dim, hidden_dim, num_classes = 50, 16, 32, 5
    B, T = 2, 8

    key = jax.random.PRNGKey(0)
    pkey, tkey = jax.random.split(key)
    params = init_params(pkey, vocab_size, embed_dim, hidden_dim, num_classes)

    tokens = jax.random.randint(tkey, (B, T), 0, vocab_size, dtype=jnp.int32)
    lengths = jnp.array([8, 5], dtype=jnp.int32)   # variable lengths, unsorted OK

    out = jax.block_until_ready(text_lstm_forward(tokens, lengths, params))
    ref = _reference_forward(tokens, lengths, params)

    assert out.shape == (B, num_classes)
    # bf16 matmul inputs with f32 accumulation -> small numeric drift vs f32 ref.
    assert jnp.allclose(out, ref, atol=2e-2, rtol=2e-2), (out, ref)

    print("KERNEL_OK")
</pallas_src>

<mosaic_0001>
module attributes {stable_mosaic.version = 11 : i64} {
  func.func @_lstm_recurrence_kernel(%arg0: i32, %arg1: i32, %arg2: memref<8x1xi32, #tpu.memory_space<vmem>>, %arg3: memref<8x8x512xbf16, #tpu.memory_space<vmem>>, %arg4: memref<128x512xbf16, #tpu.memory_space<vmem>>, %arg5: memref<8x128xf32, #tpu.memory_space<vmem>>, %arg6: memref<8x128xf32, #tpu.memory_space<vmem>>) attributes {dimension_semantics = [#tpu.dimension_semantics<parallel>, #tpu.dimension_semantics<arbitrary>], iteration_bounds = array<i64: 1, 1>, scalar_prefetch = 0 : i64, scratch_operands = 1 : i64, tpu.core_type = #tpu.core_type<tc>, window_params = [{transform_indices = @transform_0, window_bounds = array<i64: 8, 1>}, {transform_indices = @transform_1, window_bounds = array<i64: 8, 8, 512>}, {pipeline_mode = #tpu.pipeline_mode<synchronous>, transform_indices = @transform_2, window_bounds = array<i64: 128, 512>}, {transform_indices = @transform_3, window_bounds = array<i64: 8, 128>}]} {
    %c0_i32 = arith.constant 0 : i32
    %0 = arith.cmpi eq, %arg1, %c0_i32 : i32
    %1 = arith.extui %0 : i1 to i32
    %c0_i32_0 = arith.constant 0 : i32
    %2 = arith.cmpi ne, %1, %c0_i32_0 : i32
    scf.if %2 {
      %cst_61 = arith.constant 0.000000e+00 : f32
      %338 = vector.broadcast %cst_61 : f32 to vector<8x128xf32>
      %c0_62 = arith.constant 0 : index
      %c0_63 = arith.constant 0 : index
      %339 = vector.load %arg5[%c0_62, %c0_63] : memref<8x128xf32, #tpu.memory_space<vmem>>, vector<8x128xf32>
      tpu.vector_store %arg5[%c0_62, %c0_63], %338 {strides = array<i32>} : memref<8x128xf32, #tpu.memory_space<vmem>>, vector<8x128xf32>,
      %cst_64 = arith.constant 0.000000e+00 : f32
      %340 = vector.broadcast %cst_64 : f32 to vector<8x128xf32>
      %c0_65 = arith.constant 0 : index
      %c0_66 = arith.constant 0 : index
      %341 = vector.load %arg6[%c0_65, %c0_66] : memref<8x128xf32, #tpu.memory_space<vmem>>, vector<8x128xf32>
      tpu.vector_store %arg6[%c0_65, %c0_66], %340 {strides = array<i32>} : memref<8x128xf32, #tpu.memory_space<vmem>>, vector<8x128xf32>,
    } else {
    }
    %c0 = arith.constant 0 : index
    %c0_1 = arith.constant 0 : index
    %3 = vector.load %arg2[%c0, %c0_1] : memref<8x1xi32, #tpu.memory_space<vmem>>, vector<8x1xi32>
    %c0_2 = arith.constant 0 : index
    %c0_3 = arith.constant 0 : index
    %4 = vector.load %arg4[%c0_2, %c0_3] : memref<128x512xbf16, #tpu.memory_space<vmem>>, vector<128x512xbf16>
    %c8_i32 = arith.constant 8 : i32
    %5 = arith.muli %arg1, %c8_i32 : i32
    %c0_4 = arith.constant 0 : index
    %c0_5 = arith.constant 0 : index
    %6 = vector.load %arg5[%c0_4, %c0_5] : memref<8x128xf32, #tpu.memory_space<vmem>>, vector<8x128xf32>
    %c0_6 = arith.constant 0 : index
    %c0_7 = arith.constant 0 : index
    %7 = vector.load %arg6[%c0_6, %c0_7] : memref<8x128xf32, #tpu.memory_space<vmem>>, vector<8x128xf32>
    %c0_i32_8 = arith.constant 0 : i32
    %8 = arith.index_cast %c0_i32_8 : i32 to index
    %c0_9 = arith.constant 0 : index
    %c0_10 = arith.constant 0 : index
    %9 = vector.load %arg3[%8, %c0_9, %c0_10] : memref<8x8x512xbf16, #tpu.memory_space<vmem>>, vector<1x8x512xbf16>
    %10 = vector.shape_cast %9 : vector<1x8x512xbf16> to vector<8x512xbf16>
    %11 = arith.extf %10 : vector<8x512xbf16> to vector<8x512xf32>
    %12 = arith.truncf %6 : vector<8x128xf32> to vector<8x128xbf16>
    %cst = arith.constant dense<0.000000e+00> : vector<8x512xf32>
    %13 = tpu.matmul %12, %4, %cst {dimension_numbers = #tpu.dot_dimension_numbers<[1], [0], [0], [1], [0, 0, 1, 1], [], []>} : vector<8x128xbf16>, vector<128x512xbf16>, vector<8x512xf32> -> vector<8x512xf32>
    %14 = arith.addf %11, %13 : vector<8x512xf32>
    %15 = vector.extract_strided_slice %14 {offsets = [0, 0], sizes = [8, 128], strides = [1, 1]} : vector<8x512xf32> to vector<8x128xf32>
    %16 = arith.negf %15 : vector<8x128xf32>
    %17 = math.exp %16 : vector<8x128xf32>
    %cst_11 = arith.constant 1.000000e+00 : f32
    %18 = vector.broadcast %cst_11 : f32 to vector<8x128xf32>
    %19 = arith.addf %18, %17 : vector<8x128xf32>
    %20 = arith.divf %18, %19 : vector<8x128xf32>
    %21 = vector.extract_strided_slice %14 {offsets = [0, 128], sizes = [8, 128], strides = [1, 1]} : vector<8x512xf32> to vector<8x128xf32>
    %22 = arith.negf %21 : vector<8x128xf32>
    %23 = math.exp %22 : vector<8x128xf32>
    %cst_12 = arith.constant 1.000000e+00 : f32
    %24 = vector.broadcast %cst_12 : f32 to vector<8x128xf32>
    %25 = arith.addf %24, %23 : vector<8x128xf32>
    %26 = arith.divf %24, %25 : vector<8x128xf32>
    %27 = vector.extract_strided_slice %14 {offsets = [0, 256], sizes = [8, 128], strides = [1, 1]} : vector<8x512xf32> to vector<8x128xf32>
    %28 = math.tanh %27 : vector<8x128xf32>
    %29 = vector.extract_strided_slice %14 {offsets = [0, 384], sizes = [8, 128], strides = [1, 1]} : vector<8x512xf32> to vector<8x128xf32>
    %30 = arith.negf %29 : vector<8x128xf32>
    %31 = math.exp %30 : vector<8x128xf32>
    %cst_13 = arith.constant 1.000000e+00 : f32
    %32 = vector.broadcast %cst_13 : f32 to vector<8x128xf32>
    %33 = arith.addf %32, %31 : vector<8x128xf32>
    %34 = arith.divf %32, %33 : vector<8x128xf32>
    %35 = arith.mulf %26, %7 : vector<8x128xf32>
    %36 = arith.mulf %20, %28 : vector<8x128xf32>
    %37 = arith.addf %35, %36 : vector<8x128xf32>
    %38 = math.tanh %37 : vector<8x128xf32>
    %39 = arith.mulf %34, %38 : vector<8x128xf32>
    %40 = arith.addi %5, %c0_i32_8 : i32
    %41 = vector.broadcast %40 : i32 to vector<8x1xi32>
    %42 = arith.cmpi slt, %41, %3 : vector<8x1xi32>
    %43 = vector.shape_cast %42 : vector<8x1xi1> to vector<8x1xi1>
    %44 = vector.broadcast %43 : vector<8x1xi1> to vector<8x128xi1>
    %45 = arith.select %44, %39, %6 : vector<8x128xi1>, vector<8x128xf32>
    %46 = vector.shape_cast %42 : vector<8x1xi1> to vector<8x1xi1>
    %47 = vector.broadcast %46 : vector<8x1xi1> to vector<8x128xi1>
    %48 = arith.select %47, %37, %7 : vector<8x128xi1>, vector<8x128xf32>
    %c1_i32 = arith.constant 1 : i32
    %49 = arith.index_cast %c1_i32 : i32 to index
    %c0_14 = arith.constant 0 : index
    %c0_15 = arith.constant 0 : index
    %50 = vector.load %arg3[%49, %c0_14, %c0_15] : memref<8x8x512xbf16, #tpu.memory_space<vmem>>, vector<1x8x512xbf16>
    %51 = vector.shape_cast %50 : vector<1x8x512xbf16> to vector<8x512xbf16>
    %52 = arith.extf %51 : vector<8x512xbf16> to vector<8x512xf32>
    %53 = arith.truncf %45 : vector<8x128xf32> to vector<8x128xbf16>
    %cst_16 = arith.constant dense<0.000000e+00> : vector<8x512xf32>
    %54 = tpu.matmul %53, %4, %cst_16 {dimension_numbers = #tpu.dot_dimension_numbers<[1], [0], [0], [1], [0, 0, 1, 1], [], []>} : vector<8x128xbf16>, vector<128x512xbf16>, vector<8x512xf32> -> vector<8x512xf32>
    %55 = arith.addf %52, %54 : vector<8x512xf32>
    %56 = vector.extract_strided_slice %55 {offsets = [0, 0], sizes = [8, 128], strides = [1, 1]} : vector<8x512xf32> to vector<8x128xf32>
    %57 = arith.negf %56 : vector<8x128xf32>
    %58 = math.exp %57 : vector<8x128xf32>
    %cst_17 = arith.constant 1.000000e+00 : f32
    %59 = vector.broadcast %cst_17 : f32 to vector<8x128xf32>
    %60 = arith.addf %59, %58 : vector<8x128xf32>
    %61 = arith.divf %59, %60 : vector<8x128xf32>
    %62 = vector.extract_strided_slice %55 {offsets = [0, 128], sizes = [8, 128], strides = [1, 1]} : vector<8x512xf32> to vector<8x128xf32>
    %63 = arith.negf %62 : vector<8x128xf32>
    %64 = math.exp %63 : vector<8x128xf32>
    %cst_18 = arith.constant 1.000000e+00 : f32
    %65 = vector.broadcast %cst_18 : f32 to vector<8x128xf32>
    %66 = arith.addf %65, %64 : vector<8x128xf32>
    %67 = arith.divf %65, %66 : vector<8x128xf32>
    %68 = vector.extract_strided_slice %55 {offsets = [0, 256], sizes = [8, 128], strides = [1, 1]} : vector<8x512xf32> to vector<8x128xf32>
    %69 = math.tanh %68 : vector<8x128xf32>
    %70 = vector.extract_strided_slice %55 {offsets = [0, 384], sizes = [8, 128], strides = [1, 1]} : vector<8x512xf32> to vector<8x128xf32>
    %71 = arith.negf %70 : vector<8x128xf32>
    %72 = math.exp %71 : vector<8x128xf32>
    %cst_19 = arith.constant 1.000000e+00 : f32
    %73 = vector.broadcast %cst_19 : f32 to vector<8x128xf32>
    %74 = arith.addf %73, %72 : vector<8x128xf32>
    %75 = arith.divf %73, %74 : vector<8x128xf32>
    %76 = arith.mulf %67, %48 : vector<8x128xf32>
    %77 = arith.mulf %61, %69 : vector<8x128xf32>
    %78 = arith.addf %76, %77 : vector<8x128xf32>
    %79 = math.tanh %78 : vector<8x128xf32>
    %80 = arith.mulf %75, %79 : vector<8x128xf32>
    %81 = arith.addi %5, %c1_i32 : i32
    %82 = vector.broadcast %81 : i32 to vector<8x1xi32>
    %83 = arith.cmpi slt, %82, %3 : vector<8x1xi32>
    %84 = vector.shape_cast %83 : vector<8x1xi1> to vector<8x1xi1>
    %85 = vector.broadcast %84 : vector<8x1xi1> to vector<8x128xi1>
    %86 = arith.select %85, %80, %45 : vector<8x128xi1>, vector<8x128xf32>
    %87 = vector.shape_cast %83 : vector<8x1xi1> to vector<8x1xi1>
    %88 = vector.broadcast %87 : vector<8x1xi1> to vector<8x128xi1>
    %89 = arith.select %88, %78, %48 : vector<8x128xi1>, vector<8x128xf32>
    %c2_i32 = arith.constant 2 : i32
    %90 = arith.index_cast %c2_i32 : i32 to index
    %c0_20 = arith.constant 0 : index
    %c0_21 = arith.constant 0 : index
    %91 = vector.load %arg3[%90, %c0_20, %c0_21] : memref<8x8x512xbf16, #tpu.memory_space<vmem>>, vector<1x8x512xbf16>
    %92 = vector.shape_cast %91 : vector<1x8x512xbf16> to vector<8x512xbf16>
    %93 = arith.extf %92 : vector<8x512xbf16> to vector<8x512xf32>
    %94 = arith.truncf %86 : vector<8x128xf32> to vector<8x128xbf16>
    %cst_22 = arith.constant dense<0.000000e+00> : vector<8x512xf32>
    %95 = tpu.matmul %94, %4, %cst_22 {dimension_numbers = #tpu.dot_dimension_numbers<[1], [0], [0], [1], [0, 0, 1, 1], [], []>} : vector<8x128xbf16>, vector<128x512xbf16>, vector<8x512xf32> -> vector<8x512xf32>
    %96 = arith.addf %93, %95 : vector<8x512xf32>
    %97 = vector.extract_strided_slice %96 {offsets = [0, 0], sizes = [8, 128], strides = [1, 1]} : vector<8x512xf32> to vector<8x128xf32>
    %98 = arith.negf %97 : vector<8x128xf32>
    %99 = math.exp %98 : vector<8x128xf32>
    %cst_23 = arith.constant 1.000000e+00 : f32
    %100 = vector.broadcast %cst_23 : f32 to vector<8x128xf32>
    %101 = arith.addf %100, %99 : vector<8x128xf32>
    %102 = arith.divf %100, %101 : vector<8x128xf32>
    %103 = vector.extract_strided_slice %96 {offsets = [0, 128], sizes = [8, 128], strides = [1, 1]} : vector<8x512xf32> to vector<8x128xf32>
    %104 = arith.negf %103 : vector<8x128xf32>
    %105 = math.exp %104 : vector<8x128xf32>
    %cst_24 = arith.constant 1.000000e+00 : f32
    %106 = vector.broadcast %cst_24 : f32 to vector<8x128xf32>
    %107 = arith.addf %106, %105 : vector<8x128xf32>
    %108 = arith.divf %106, %107 : vector<8x128xf32>
    %109 = vector.extract_strided_slice %96 {offsets = [0, 256], sizes = [8, 128], strides = [1, 1]} : vector<8x512xf32> to vector<8x128xf32>
    %110 = math.tanh %109 : vector<8x128xf32>
    %111 = vector.extract_strided_slice %96 {offsets = [0, 384], sizes = [8, 128], strides = [1, 1]} : vector<8x512xf32> to vector<8x128xf32>
    %112 = arith.negf %111 : vector<8x128xf32>
    %113 = math.exp %112 : vector<8x128xf32>
    %cst_25 = arith.constant 1.000000e+00 : f32
    %114 = vector.broadcast %cst_25 : f32 to vector<8x128xf32>
    %115 = arith.addf %114, %113 : vector<8x128xf32>
    %116 = arith.divf %114, %115 : vector<8x128xf32>
    %117 = arith.mulf %108, %89 : vector<8x128xf32>
    %118 = arith.mulf %102, %110 : vector<8x128xf32>
    %119 = arith.addf %117, %118 : vector<8x128xf32>
    %120 = math.tanh %119 : vector<8x128xf32>
    %121 = arith.mulf %116, %120 : vector<8x128xf32>
    %122 = arith.addi %5, %c2_i32 : i32
    %123 = vector.broadcast %122 : i32 to vector<8x1xi32>
    %124 = arith.cmpi slt, %123, %3 : vector<8x1xi32>
    %125 = vector.shape_cast %124 : vector<8x1xi1> to vector<8x1xi1>
    %126 = vector.broadcast %125 : vector<8x1xi1> to vector<8x128xi1>
    %127 = arith.select %126, %121, %86 : vector<8x128xi1>, vector<8x128xf32>
    %128 = vector.shape_cast %124 : vector<8x1xi1> to vector<8x1xi1>
    %129 = vector.broadcast %128 : vector<8x1xi1> to vector<8x128xi1>
    %130 = arith.select %129, %119, %89 : vector<8x128xi1>, vector<8x128xf32>
    %c3_i32 = arith.constant 3 : i32
    %131 = arith.index_cast %c3_i32 : i32 to index
    %c0_26 = arith.constant 0 : index
    %c0_27 = arith.constant 0 : index
    %132 = vector.load %arg3[%131, %c0_26, %c0_27] : memref<8x8x512xbf16, #tpu.memory_space<vmem>>, vector<1x8x512xbf16>
    %133 = vector.shape_cast %132 : vector<1x8x512xbf16> to vector<8x512xbf16>
    %134 = arith.extf %133 : vector<8x512xbf16> to vector<8x512xf32>
    %135 = arith.truncf %127 : vector<8x128xf32> to vector<8x128xbf16>
    %cst_28 = arith.constant dense<0.000000e+00> : vector<8x512xf32>
    %136 = tpu.matmul %135, %4, %cst_28 {dimension_numbers = #tpu.dot_dimension_numbers<[1], [0], [0], [1], [0, 0, 1, 1], [], []>} : vector<8x128xbf16>, vector<128x512xbf16>, vector<8x512xf32> -> vector<8x512xf32>
    %137 = arith.addf %134, %136 : vector<8x512xf32>
    %138 = vector.extract_strided_slice %137 {offsets = [0, 0], sizes = [8, 128], strides = [1, 1]} : vector<8x512xf32> to vector<8x128xf32>
    %139 = arith.negf %138 : vector<8x128xf32>
    %140 = math.exp %139 : vector<8x128xf32>
    %cst_29 = arith.constant 1.000000e+00 : f32
    %141 = vector.broadcast %cst_29 : f32 to vector<8x128xf32>
    %142 = arith.addf %141, %140 : vector<8x128xf32>
    %143 = arith.divf %141, %142 : vector<8x128xf32>
    %144 = vector.extract_strided_slice %137 {offsets = [0, 128], sizes = [8, 128], strides = [1, 1]} : vector<8x512xf32> to vector<8x128xf32>
    %145 = arith.negf %144 : vector<8x128xf32>
    %146 = math.exp %145 : vector<8x128xf32>
    %cst_30 = arith.constant 1.000000e+00 : f32
    %147 = vector.broadcast %cst_30 : f32 to vector<8x128xf32>
    %148 = arith.addf %147, %146 : vector<8x128xf32>
    %149 = arith.divf %147, %148 : vector<8x128xf32>
    %150 = vector.extract_strided_slice %137 {offsets = [0, 256], sizes = [8, 128], strides = [1, 1]} : vector<8x512xf32> to vector<8x128xf32>
    %151 = math.tanh %150 : vector<8x128xf32>
    %152 = vector.extract_strided_slice %137 {offsets = [0, 384], sizes = [8, 128], strides = [1, 1]} : vector<8x512xf32> to vector<8x128xf32>
    %153 = arith.negf %152 : vector<8x128xf32>
    %154 = math.exp %153 : vector<8x128xf32>
    %cst_31 = arith.constant 1.000000e+00 : f32
    %155 = vector.broadcast %cst_31 : f32 to vector<8x128xf32>
    %156 = arith.addf %155, %154 : vector<8x128xf32>
    %157 = arith.divf %155, %156 : vector<8x128xf32>
    %158 = arith.mulf %149, %130 : vector<8x128xf32>
    %159 = arith.mulf %143, %151 : vector<8x128xf32>
    %160 = arith.addf %158, %159 : vector<8x128xf32>
    %161 = math.tanh %160 : vector<8x128xf32>
    %162 = arith.mulf %157, %161 : vector<8x128xf32>
    %163 = arith.addi %5, %c3_i32 : i32
    %164 = vector.broadcast %163 : i32 to vector<8x1xi32>
    %165 = arith.cmpi slt, %164, %3 : vector<8x1xi32>
    %166 = vector.shape_cast %165 : vector<8x1xi1> to vector<8x1xi1>
    %167 = vector.broadcast %166 : vector<8x1xi1> to vector<8x128xi1>
    %168 = arith.select %167, %162, %127 : vector<8x128xi1>, vector<8x128xf32>
    %169 = vector.shape_cast %165 : vector<8x1xi1> to vector<8x1xi1>
    %170 = vector.broadcast %169 : vector<8x1xi1> to vector<8x128xi1>
    %171 = arith.select %170, %160, %130 : vector<8x128xi1>, vector<8x128xf32>
    %c4_i32 = arith.constant 4 : i32
    %172 = arith.index_cast %c4_i32 : i32 to index
    %c0_32 = arith.constant 0 : index
    %c0_33 = arith.constant 0 : index
    %173 = vector.load %arg3[%172, %c0_32, %c0_33] : memref<8x8x512xbf16, #tpu.memory_space<vmem>>, vector<1x8x512xbf16>
    %174 = vector.shape_cast %173 : vector<1x8x512xbf16> to vector<8x512xbf16>
    %175 = arith.extf %174 : vector<8x512xbf16> to vector<8x512xf32>
    %176 = arith.truncf %168 : vector<8x128xf32> to vector<8x128xbf16>
    %cst_34 = arith.constant dense<0.000000e+00> : vector<8x512xf32>
    %177 = tpu.matmul %176, %4, %cst_34 {dimension_numbers = #tpu.dot_dimension_numbers<[1], [0], [0], [1], [0, 0, 1, 1], [], []>} : vector<8x128xbf16>, vector<128x512xbf16>, vector<8x512xf32> -> vector<8x512xf32>
    %178 = arith.addf %175, %177 : vector<8x512xf32>
    %179 = vector.extract_strided_slice %178 {offsets = [0, 0], sizes = [8, 128], strides = [1, 1]} : vector<8x512xf32> to vector<8x128xf32>
    %180 = arith.negf %179 : vector<8x128xf32>
    %181 = math.exp %180 : vector<8x128xf32>
    %cst_35 = arith.constant 1.000000e+00 : f32
    %182 = vector.broadcast %cst_35 : f32 to vector<8x128xf32>
    %183 = arith.addf %182, %181 : vector<8x128xf32>
    %184 = arith.divf %182, %183 : vector<8x128xf32>
    %185 = vector.extract_strided_slice %178 {offsets = [0, 128], sizes = [8, 128], strides = [1, 1]} : vector<8x512xf32> to vector<8x128xf32>
    %186 = arith.negf %185 : vector<8x128xf32>
    %187 = math.exp %186 : vector<8x128xf32>
    %cst_36 = arith.constant 1.000000e+00 : f32
    %188 = vector.broadcast %cst_36 : f32 to vector<8x128xf32>
    %189 = arith.addf %188, %187 : vector<8x128xf32>
    %190 = arith.divf %188, %189 : vector<8x128xf32>
    %191 = vector.extract_strided_slice %178 {offsets = [0, 256], sizes = [8, 128], strides = [1, 1]} : vector<8x512xf32> to vector<8x128xf32>
    %192 = math.tanh %191 : vector<8x128xf32>
    %193 = vector.extract_strided_slice %178 {offsets = [0, 384], sizes = [8, 128], strides = [1, 1]} : vector<8x512xf32> to vector<8x128xf32>
    %194 = arith.negf %193 : vector<8x128xf32>
    %195 = math.exp %194 : vector<8x128xf32>
    %cst_37 = arith.constant 1.000000e+00 : f32
    %196 = vector.broadcast %cst_37 : f32 to vector<8x128xf32>
    %197 = arith.addf %196, %195 : vector<8x128xf32>
    %198 = arith.divf %196, %197 : vector<8x128xf32>
    %199 = arith.mulf %190, %171 : vector<8x128xf32>
    %200 = arith.mulf %184, %192 : vector<8x128xf32>
    %201 = arith.addf %199, %200 : vector<8x128xf32>
    %202 = math.tanh %201 : vector<8x128xf32>
    %203 = arith.mulf %198, %202 : vector<8x128xf32>
    %204 = arith.addi %5, %c4_i32 : i32
    %205 = vector.broadcast %204 : i32 to vector<8x1xi32>
    %206 = arith.cmpi slt, %205, %3 : vector<8x1xi32>
    %207 = vector.shape_cast %206 : vector<8x1xi1> to vector<8x1xi1>
    %208 = vector.broadcast %207 : vector<8x1xi1> to vector<8x128xi1>
    %209 = arith.select %208, %203, %168 : vector<8x128xi1>, vector<8x128xf32>
    %210 = vector.shape_cast %206 : vector<8x1xi1> to vector<8x1xi1>
    %211 = vector.broadcast %210 : vector<8x1xi1> to vector<8x128xi1>
    %212 = arith.select %211, %201, %171 : vector<8x128xi1>, vector<8x128xf32>
    %c5_i32 = arith.constant 5 : i32
    %213 = arith.index_cast %c5_i32 : i32 to index
    %c0_38 = arith.constant 0 : index
    %c0_39 = arith.constant 0 : index
    %214 = vector.load %arg3[%213, %c0_38, %c0_39] : memref<8x8x512xbf16, #tpu.memory_space<vmem>>, vector<1x8x512xbf16>
    %215 = vector.shape_cast %214 : vector<1x8x512xbf16> to vector<8x512xbf16>
    %216 = arith.extf %215 : vector<8x512xbf16> to vector<8x512xf32>
    %217 = arith.truncf %209 : vector<8x128xf32> to vector<8x128xbf16>
    %cst_40 = arith.constant dense<0.000000e+00> : vector<8x512xf32>
    %218 = tpu.matmul %217, %4, %cst_40 {dimension_numbers = #tpu.dot_dimension_numbers<[1], [0], [0], [1], [0, 0, 1, 1], [], []>} : vector<8x128xbf16>, vector<128x512xbf16>, vector<8x512xf32> -> vector<8x512xf32>
    %219 = arith.addf %216, %218 : vector<8x512xf32>
    %220 = vector.extract_strided_slice %219 {offsets = [0, 0], sizes = [8, 128], strides = [1, 1]} : vector<8x512xf32> to vector<8x128xf32>
    %221 = arith.negf %220 : vector<8x128xf32>
    %222 = math.exp %221 : vector<8x128xf32>
    %cst_41 = arith.constant 1.000000e+00 : f32
    %223 = vector.broadcast %cst_41 : f32 to vector<8x128xf32>
    %224 = arith.addf %223, %222 : vector<8x128xf32>
    %225 = arith.divf %223, %224 : vector<8x128xf32>
    %226 = vector.extract_strided_slice %219 {offsets = [0, 128], sizes = [8, 128], strides = [1, 1]} : vector<8x512xf32> to vector<8x128xf32>
    %227 = arith.negf %226 : vector<8x128xf32>
    %228 = math.exp %227 : vector<8x128xf32>
    %cst_42 = arith.constant 1.000000e+00 : f32
    %229 = vector.broadcast %cst_42 : f32 to vector<8x128xf32>
    %230 = arith.addf %229, %228 : vector<8x128xf32>
    %231 = arith.divf %229, %230 : vector<8x128xf32>
    %232 = vector.extract_strided_slice %219 {offsets = [0, 256], sizes = [8, 128], strides = [1, 1]} : vector<8x512xf32> to vector<8x128xf32>
    %233 = math.tanh %232 : vector<8x128xf32>
    %234 = vector.extract_strided_slice %219 {offsets = [0, 384], sizes = [8, 128], strides = [1, 1]} : vector<8x512xf32> to vector<8x128xf32>
    %235 = arith.negf %234 : vector<8x128xf32>
    %236 = math.exp %235 : vector<8x128xf32>
    %cst_43 = arith.constant 1.000000e+00 : f32
    %237 = vector.broadcast %cst_43 : f32 to vector<8x128xf32>
    %238 = arith.addf %237, %236 : vector<8x128xf32>
    %239 = arith.divf %237, %238 : vector<8x128xf32>
    %240 = arith.mulf %231, %212 : vector<8x128xf32>
    %241 = arith.mulf %225, %233 : vector<8x128xf32>
    %242 = arith.addf %240, %241 : vector<8x128xf32>
    %243 = math.tanh %242 : vector<8x128xf32>
    %244 = arith.mulf %239, %243 : vector<8x128xf32>
    %245 = arith.addi %5, %c5_i32 : i32
    %246 = vector.broadcast %245 : i32 to vector<8x1xi32>
    %247 = arith.cmpi slt, %246, %3 : vector<8x1xi32>
    %248 = vector.shape_cast %247 : vector<8x1xi1> to vector<8x1xi1>
    %249 = vector.broadcast %248 : vector<8x1xi1> to vector<8x128xi1>
    %250 = arith.select %249, %244, %209 : vector<8x128xi1>, vector<8x128xf32>
    %251 = vector.shape_cast %247 : vector<8x1xi1> to vector<8x1xi1>
    %252 = vector.broadcast %251 : vector<8x1xi1> to vector<8x128xi1>
    %253 = arith.select %252, %242, %212 : vector<8x128xi1>, vector<8x128xf32>
    %c6_i32 = arith.constant 6 : i32
    %254 = arith.index_cast %c6_i32 : i32 to index
    %c0_44 = arith.constant 0 : index
    %c0_45 = arith.constant 0 : index
    %255 = vector.load %arg3[%254, %c0_44, %c0_45] : memref<8x8x512xbf16, #tpu.memory_space<vmem>>, vector<1x8x512xbf16>
    %256 = vector.shape_cast %255 : vector<1x8x512xbf16> to vector<8x512xbf16>
    %257 = arith.extf %256 : vector<8x512xbf16> to vector<8x512xf32>
    %258 = arith.truncf %250 : vector<8x128xf32> to vector<8x128xbf16>
    %cst_46 = arith.constant dense<0.000000e+00> : vector<8x512xf32>
    %259 = tpu.matmul %258, %4, %cst_46 {dimension_numbers = #tpu.dot_dimension_numbers<[1], [0], [0], [1], [0, 0, 1, 1], [], []>} : vector<8x128xbf16>, vector<128x512xbf16>, vector<8x512xf32> -> vector<8x512xf32>
    %260 = arith.addf %257, %259 : vector<8x512xf32>
    %261 = vector.extract_strided_slice %260 {offsets = [0, 0], sizes = [8, 128], strides = [1, 1]} : vector<8x512xf32> to vector<8x128xf32>
    %262 = arith.negf %261 : vector<8x128xf32>
    %263 = math.exp %262 : vector<8x128xf32>
    %cst_47 = arith.constant 1.000000e+00 : f32
    %264 = vector.broadcast %cst_47 : f32 to vector<8x128xf32>
    %265 = arith.addf %264, %263 : vector<8x128xf32>
    %266 = arith.divf %264, %265 : vector<8x128xf32>
    %267 = vector.extract_strided_slice %260 {offsets = [0, 128], sizes = [8, 128], strides = [1, 1]} : vector<8x512xf32> to vector<8x128xf32>
    %268 = arith.negf %267 : vector<8x128xf32>
    %269 = math.exp %268 : vector<8x128xf32>
    %cst_48 = arith.constant 1.000000e+00 : f32
    %270 = vector.broadcast %cst_48 : f32 to vector<8x128xf32>
    %271 = arith.addf %270, %269 : vector<8x128xf32>
    %272 = arith.divf %270, %271 : vector<8x128xf32>
    %273 = vector.extract_strided_slice %260 {offsets = [0, 256], sizes = [8, 128], strides = [1, 1]} : vector<8x512xf32> to vector<8x128xf32>
    %274 = math.tanh %273 : vector<8x128xf32>
    %275 = vector.extract_strided_slice %260 {offsets = [0, 384], sizes = [8, 128], strides = [1, 1]} : vector<8x512xf32> to vector<8x128xf32>
    %276 = arith.negf %275 : vector<8x128xf32>
    %277 = math.exp %276 : vector<8x128xf32>
    %cst_49 = arith.constant 1.000000e+00 : f32
    %278 = vector.broadcast %cst_49 : f32 to vector<8x128xf32>
    %279 = arith.addf %278, %277 : vector<8x128xf32>
    %280 = arith.divf %278, %279 : vector<8x128xf32>
    %281 = arith.mulf %272, %253 : vector<8x128xf32>
    %282 = arith.mulf %266, %274 : vector<8x128xf32>
    %283 = arith.addf %281, %282 : vector<8x128xf32>
    %284 = math.tanh %283 : vector<8x128xf32>
    %285 = arith.mulf %280, %284 : vector<8x128xf32>
    %286 = arith.addi %5, %c6_i32 : i32
    %287 = vector.broadcast %286 : i32 to vector<8x1xi32>
    %288 = arith.cmpi slt, %287, %3 : vector<8x1xi32>
    %289 = vector.shape_cast %288 : vector<8x1xi1> to vector<8x1xi1>
    %290 = vector.broadcast %289 : vector<8x1xi1> to vector<8x128xi1>
    %291 = arith.select %290, %285, %250 : vector<8x128xi1>, vector<8x128xf32>
    %292 = vector.shape_cast %288 : vector<8x1xi1> to vector<8x1xi1>
    %293 = vector.broadcast %292 : vector<8x1xi1> to vector<8x128xi1>
    %294 = arith.select %293, %283, %253 : vector<8x128xi1>, vector<8x128xf32>
    %c7_i32 = arith.constant 7 : i32
    %295 = arith.index_cast %c7_i32 : i32 to index
    %c0_50 = arith.constant 0 : index
    %c0_51 = arith.constant 0 : index
    %296 = vector.load %arg3[%295, %c0_50, %c0_51] : memref<8x8x512xbf16, #tpu.memory_space<vmem>>, vector<1x8x512xbf16>
    %297 = vector.shape_cast %296 : vector<1x8x512xbf16> to vector<8x512xbf16>
    %298 = arith.extf %297 : vector<8x512xbf16> to vector<8x512xf32>
    %299 = arith.truncf %291 : vector<8x128xf32> to vector<8x128xbf16>
    %cst_52 = arith.constant dense<0.000000e+00> : vector<8x512xf32>
    %300 = tpu.matmul %299, %4, %cst_52 {dimension_numbers = #tpu.dot_dimension_numbers<[1], [0], [0], [1], [0, 0, 1, 1], [], []>} : vector<8x128xbf16>, vector<128x512xbf16>, vector<8x512xf32> -> vector<8x512xf32>
    %301 = arith.addf %298, %300 : vector<8x512xf32>
    %302 = vector.extract_strided_slice %301 {offsets = [0, 0], sizes = [8, 128], strides = [1, 1]} : vector<8x512xf32> to vector<8x128xf32>
    %303 = arith.negf %302 : vector<8x128xf32>
    %304 = math.exp %303 : vector<8x128xf32>
    %cst_53 = arith.constant 1.000000e+00 : f32
    %305 = vector.broadcast %cst_53 : f32 to vector<8x128xf32>
    %306 = arith.addf %305, %304 : vector<8x128xf32>
    %307 = arith.divf %305, %306 : vector<8x128xf32>
    %308 = vector.extract_strided_slice %301 {offsets = [0, 128], sizes = [8, 128], strides = [1, 1]} : vector<8x512xf32> to vector<8x128xf32>
    %309 = arith.negf %308 : vector<8x128xf32>
    %310 = math.exp %309 : vector<8x128xf32>
    %cst_54 = arith.constant 1.000000e+00 : f32
    %311 = vector.broadcast %cst_54 : f32 to vector<8x128xf32>
    %312 = arith.addf %311, %310 : vector<8x128xf32>
    %313 = arith.divf %311, %312 : vector<8x128xf32>
    %314 = vector.extract_strided_slice %301 {offsets = [0, 256], sizes = [8, 128], strides = [1, 1]} : vector<8x512xf32> to vector<8x128xf32>
    %315 = math.tanh %314 : vector<8x128xf32>
    %316 = vector.extract_strided_slice %301 {offsets = [0, 384], sizes = [8, 128], strides = [1, 1]} : vector<8x512xf32> to vector<8x128xf32>
    %317 = arith.negf %316 : vector<8x128xf32>
    %318 = math.exp %317 : vector<8x128xf32>
    %cst_55 = arith.constant 1.000000e+00 : f32
    %319 = vector.broadcast %cst_55 : f32 to vector<8x128xf32>
    %320 = arith.addf %319, %318 : vector<8x128xf32>
    %321 = arith.divf %319, %320 : vector<8x128xf32>
    %322 = arith.mulf %313, %294 : vector<8x128xf32>
    %323 = arith.mulf %307, %315 : vector<8x128xf32>
    %324 = arith.addf %322, %323 : vector<8x128xf32>
    %325 = math.tanh %324 : vector<8x128xf32>
    %326 = arith.mulf %321, %325 : vector<8x128xf32>
    %327 = arith.addi %5, %c7_i32 : i32
    %328 = vector.broadcast %327 : i32 to vector<8x1xi32>
    %329 = arith.cmpi slt, %328, %3 : vector<8x1xi32>
    %330 = vector.shape_cast %329 : vector<8x1xi1> to vector<8x1xi1>
    %331 = vector.broadcast %330 : vector<8x1xi1> to vector<8x128xi1>
    %332 = arith.select %331, %326, %291 : vector<8x128xi1>, vector<8x128xf32>
    %333 = vector.shape_cast %329 : vector<8x1xi1> to vector<8x1xi1>
    %334 = vector.broadcast %333 : vector<8x1xi1> to vector<8x128xi1>
    %335 = arith.select %334, %324, %294 : vector<8x128xi1>, vector<8x128xf32>
    %c8_i32_56 = arith.constant 8 : i32
    %c0_57 = arith.constant 0 : index
    %c0_58 = arith.constant 0 : index
    %336 = vector.load %arg5[%c0_57, %c0_58] : memref<8x128xf32, #tpu.memory_space<vmem>>, vector<8x128xf32>
    tpu.vector_store %arg5[%c0_57, %c0_58], %332 {strides = array<i32>} : memref<8x128xf32, #tpu.memory_space<vmem>>, vector<8x128xf32>,
    %c0_59 = arith.constant 0 : index
    %c0_60 = arith.constant 0 : index
    %337 = vector.load %arg6[%c0_59, %c0_60] : memref<8x128xf32, #tpu.memory_space<vmem>>, vector<8x128xf32>
    tpu.vector_store %arg6[%c0_59, %c0_60], %335 {strides = array<i32>} : memref<8x128xf32, #tpu.memory_space<vmem>>, vector<8x128xf32>,
    return
  }
  func.func @transform_0(%arg0: i32, %arg1: i32) -> (i32, i32) {
    %c0_i32 = arith.constant 0 : i32
    %c0_i32_0 = arith.constant 0 : i32
    return %arg0, %c0_i32 : i32, i32
  }
  func.func @transform_1(%arg0: i32, %arg1: i32) -> (i32, i32, i32) {
    %c0_i32 = arith.constant 0 : i32
    %c0_i32_0 = arith.constant 0 : i32
    return %arg1, %arg0, %c0_i32 : i32, i32, i32
  }
  func.func @transform_2(%arg0: i32, %arg1: i32) -> (i32, i32) {
    %c0_i32 = arith.constant 0 : i32
    %c0_i32_0 = arith.constant 0 : i32
    %c0_i32_1 = arith.constant 0 : i32
    return %c0_i32, %c0_i32_0 : i32, i32
  }
  func.func @transform_3(%arg0: i32, %arg1: i32) -> (i32, i32) {
    %c0_i32 = arith.constant 0 : i32
    %c0_i32_0 = arith.constant 0 : i32
    return %arg0, %c0_i32 : i32, i32
  }
}

</mosaic_0001>

<llo_original>
// kernel: tpu_custom_call.1
$region0: #{tpu_custom_call.1}
  #allocation0 [shape = 'u32[]', space=smem, size = 0x4, offset = 0x4, fixed_abs, tag = 'smem constant byte address 0x4 - core index']
  #allocation1 [shape = 'u32[144,128]{1,0:T(1,128)}', space=vmem, size = 0x12000, scoped, tag = 'internal scratch']
  #allocation2 [shape = 'f32[8,128]{1,0:T(8,128)}', space=vmem, size = 0x1000, scoped, tag = 'scratch operand']
  %s0 = inlined_call_operand.vmem [shape: s32[8,1], index: 0, kind: input, shape index: {}]
  %s1 = inlined_call_operand.hbm [shape: bf16[8,8,512], index: 1, kind: input, shape index: {}]
  %s2 = inlined_call_operand.hbm [shape: bf16[128,512], index: 2, kind: input, shape index: {}]
  %s3 = inlined_call_operand.hbm [shape: f32[8,128], index: 3, kind: output, shape index: {}]
  %s4 = sld [smem:[#allocation0]]
  $region34: #{tpu_custom_call.1} parent=0
    _
  %s6 = ssub.s32 1, %s4
  %s7 = scalar_select 0, %s6, %s4
  $region1: #{tpu_custom_call.1} parent=0
    #allocation3 [shape = 'u8[65536]{0}', space=vmem, size = 0x10000, scoped, tag = 'input window, operand 1, single buffered']
    #allocation4 [shape = 's32[1]{0}', space=sflag, size = 0x4, scoped, tag = 'scoped memory for tpu_custom_call.1']
    #allocation5 [shape = 's32[1]{0}', space=sflag, size = 0x4, scoped, tag = 'scoped memory for tpu_custom_call.1']
    #allocation6 [shape = 'u8[131072]{0}', space=vmem, size = 0x20000, scoped, tag = 'input window, operand 2, single buffered']
    #allocation7 [shape = 's32[1]{0}', space=sflag, size = 0x4, scoped, tag = 'scoped memory for tpu_custom_call.1']
    #allocation8 [shape = 'u8[4096]{0}', space=vmem, size = 0x1000, scoped, tag = 'output window, operand 0, single buffered']
    %8 = vsyncpa [#allocation4], 0
    %9 = vsyncpa [#allocation7], 0
    %10 = vsyncpa [#allocation5], 0
    // Predicated region
    $region2: #{tpu_custom_call.1} parent=1 // pred_check
      _
    $region3: #{tpu_custom_call.1} parent=1 // pred_check_branch
      %12 = sbr.rel (0) target = $region5
    $region4: #{tpu_custom_call.1} parent=1 // pred_region
      _
    $region5: #{tpu_custom_call.1} parent=1 // pred_fallthru
      _
    // Predicated region
    $region6: #{tpu_custom_call.1} parent=1 // pred_check
      _
    $region7: #{tpu_custom_call.1} parent=1 // pred_check_branch
      %14 = sbr.rel (0) target = $region9
    $region8: #{tpu_custom_call.1} parent=1 // pred_region
      %s16 = ssub.s32 2048, 2048
      %17 = vsyncadd [#allocation4], %s16
      %s18 = sshll.u32 [#allocation3], 4
      %s19 = int_to_ptr.vmem [resolvable:$true] %s18
      %24 = dma.hbm_to_vmem [thread:$0]  %s1, 2048, %s19, [#allocation4], 256, 256, 16
    $region9: #{tpu_custom_call.1} parent=1 // pred_fallthru
      _
    // Predicated region
    $region10: #{tpu_custom_call.1} parent=1 // pred_check
      _
    $region11: #{tpu_custom_call.1} parent=1 // pred_check_branch
      %26 = sbr.rel (0) target = $region13
    $region12: #{tpu_custom_call.1} parent=1 // pred_region
      %s28 = ssub.s32 4096, 4096
      %29 = vsyncadd [#allocation7], %s28
      %s30 = sshll.u32 [#allocation6], 4
      %s31 = int_to_ptr.vmem [resolvable:$true] %s30
      %36 = dma.hbm_to_vmem [thread:$0]  %s2, 4096, %s31, [#allocation7], 256, 256, 16
    $region13: #{tpu_custom_call.1} parent=1 // pred_fallthru
      _
    // Predicated region
    $region14: #{tpu_custom_call.1} parent=1 // pred_check
      _
    $region15: #{tpu_custom_call.1} parent=1 // pred_check_branch
      %38 = sbr.rel (0) target = $region17
    $region16: #{tpu_custom_call.1} parent=1 // pred_region
      %39 = dma.done [#allocation4], 2048
    $region17: #{tpu_custom_call.1} parent=1 // pred_fallthru
      _
    // Predicated region
    $region18: #{tpu_custom_call.1} parent=1 // pred_check
      _
    $region19: #{tpu_custom_call.1} parent=1 // pred_check_branch
      %41 = sbr.rel (0) target = $region21
    $region20: #{tpu_custom_call.1} parent=1 // pred_region
      %42 = dma.done [#allocation7], 4096
    $region21: #{tpu_custom_call.1} parent=1 // pred_fallthru
      _
    %p44 = scmp.eq.s32.totalorder 0, 0
    // Predicated region
    $region22: #{tpu_custom_call.1} parent=1 // pred_check
      %p45 = pneg %p44
    $region23: #{tpu_custom_call.1} parent=1 // pred_check_branch
      %47 = sbr.rel (%p45) target = $region25
    $region24: #{tpu_custom_call.1} parent=1 // pred_region
      %48 = vst [vmem:[#allocation8] sm:$0xff] 0.0
      %49 = vst [vmem:[#allocation2] sm:$0xff] 0.0
    $region25: #{tpu_custom_call.1} parent=1 // pred_fallthru
      _
    %v50 = vld [vmem:[%s0] sm:$0xff]
    %v51 = vld [vmem:[#allocation6] sm:$0xff]
    %v52 = vld [vmem:[#allocation6 + $0x8] sm:$0xff]
    %v53 = vld [vmem:[#allocation6 + $0x10] sm:$0xff]
    %v54 = vld [vmem:[#allocation6 + $0x18] sm:$0xff]
    %v55 = vld [vmem:[#allocation6 + $0x20] sm:$0xff]
    %v56 = vld [vmem:[#allocation6 + $0x28] sm:$0xff]
    %v57 = vld [vmem:[#allocation6 + $0x30] sm:$0xff]
    %v58 = vld [vmem:[#allocation6 + $0x38] sm:$0xff]
    %v59 = vld [vmem:[#allocation6 + $0x40] sm:$0xff]
    %v60 = vld [vmem:[#allocation6 + $0x48] sm:$0xff]
    %v61 = vld [vmem:[#allocation6 + $0x50] sm:$0xff]
    %v62 = vld [vmem:[#allocation6 + $0x58] sm:$0xff]
    %v63 = vld [vmem:[#allocation6 + $0x60] sm:$0xff]
    %v64 = vld [vmem:[#allocation6 + $0x68] sm:$0xff]
    %v65 = vld [vmem:[#allocation6 + $0x70] sm:$0xff]
    %v66 = vld [vmem:[#allocation6 + $0x78] sm:$0xff]
    %v67 = vld [vmem:[#allocation6 + $0x80] sm:$0xff]
    %v68 = vld [vmem:[#allocation6 + $0x88] sm:$0xff]
    %v69 = vld [vmem:[#allocation6 + $0x90] sm:$0xff]
    %v70 = vld [vmem:[#allocation6 + $0x98] sm:$0xff]
    %v71 = vld [vmem:[#allocation6 + $0xa0] sm:$0xff]
    %v72 = vld [vmem:[#allocation6 + $0xa8] sm:$0xff]
    %v73 = vld [vmem:[#allocation6 + $0xb0] sm:$0xff]
    %v74 = vld [vmem:[#allocation6 + $0xb8] sm:$0xff]
    %v75 = vld [vmem:[#allocation6 + $0xc0] sm:$0xff]
    %v76 = vld [vmem:[#allocation6 + $0xc8] sm:$0xff]
    %v77 = vld [vmem:[#allocation6 + $0xd0] sm:$0xff]
    %v78 = vld [vmem:[#allocation6 + $0xd8] sm:$0xff]
    %v79 = vld [vmem:[#allocation6 + $0xe0] sm:$0xff]
    %v80 = vld [vmem:[#allocation6 + $0xe8] sm:$0xff]
    %v81 = vld [vmem:[#allocation6 + $0xf0] sm:$0xff]
    %v82 = vld [vmem:[#allocation6 + $0xf8] sm:$0xff]
    %s83 = smul.u32 0, 8
    %v84 = vld [vmem:[#allocation8] sm:$0xff]
    %v85 = vld [vmem:[#allocation2] sm:$0xff]
    %v86 = vld [vmem:[#allocation3] sm:$0xff]
    %v87 = vld [vmem:[#allocation3 + $0x8] sm:$0xff]
    %v88 = vunpack.c.l.bf16 %v86
    %v89 = vunpack.c.h.bf16 %v86
    %v90 = vunpack.c.l.bf16 %v87
    %v91 = vunpack.c.h.bf16 %v87
    %v92 = vpack.c.bf16 %v84, %v84
    %v125 = vunpack.c.l.b16 %v51
    %v126 = vunpack.c.h.b16 %v51
    %v127 = vunpack.c.l.b16 %v52
    %v128 = vunpack.c.h.b16 %v52
    %v129 = vunpack.c.l.b16 %v53
    %v130 = vunpack.c.h.b16 %v53
    %v131 = vunpack.c.l.b16 %v54
    %v132 = vunpack.c.h.b16 %v54
    %v133 = vunpack.c.l.b16 %v55
    %v134 = vunpack.c.h.b16 %v55
    %v135 = vunpack.c.l.b16 %v56
    %v136 = vunpack.c.h.b16 %v56
    %v137 = vunpack.c.l.b16 %v57
    %v138 = vunpack.c.h.b16 %v57
    %v139 = vunpack.c.l.b16 %v58
    %v140 = vunpack.c.h.b16 %v58
    %v141 = vunpack.c.l.b16 %v59
    %v142 = vunpack.c.h.b16 %v59
    %v143 = vunpack.c.l.b16 %v60
    %v144 = vunpack.c.h.b16 %v60
    %v145 = vunpack.c.l.b16 %v61
    %v146 = vunpack.c.h.b16 %v61
    %v147 = vunpack.c.l.b16 %v62
    %v148 = vunpack.c.h.b16 %v62
    %v149 = vunpack.c.l.b16 %v63
    %v150 = vunpack.c.h.b16 %v63
    %v151 = vunpack.c.l.b16 %v64
    %v152 = vunpack.c.h.b16 %v64
    %v153 = vunpack.c.l.b16 %v65
    %v154 = vunpack.c.h.b16 %v65
    %v155 = vunpack.c.l.b16 %v66
    %v156 = vunpack.c.h.b16 %v66
    %v157 = vunpack.c.l.b16 %v67
    %v158 = vunpack.c.h.b16 %v67
    %v159 = vunpack.c.l.b16 %v68
    %v160 = vunpack.c.h.b16 %v68
    %v161 = vunpack.c.l.b16 %v69
    %v162 = vunpack.c.h.b16 %v69
    %v163 = vunpack.c.l.b16 %v70
    %v164 = vunpack.c.h.b16 %v70
    %v165 = vunpack.c.l.b16 %v71
    %v166 = vunpack.c.h.b16 %v71
    %v167 = vunpack.c.l.b16 %v72
    %v168 = vunpack.c.h.b16 %v72
    %v169 = vunpack.c.l.b16 %v73
    %v170 = vunpack.c.h.b16 %v73
    %v171 = vunpack.c.l.b16 %v74
    %v172 = vunpack.c.h.b16 %v74
    %v173 = vunpack.c.l.b16 %v75
    %v174 = vunpack.c.h.b16 %v75
    %v175 = vunpack.c.l.b16 %v76
    %v176 = vunpack.c.h.b16 %v76
    %v177 = vunpack.c.l.b16 %v77
    %v178 = vunpack.c.h.b16 %v77
    %v179 = vunpack.c.l.b16 %v78
    %v180 = vunpack.c.h.b16 %v78
    %v181 = vunpack.c.l.b16 %v79
    %v182 = vunpack.c.h.b16 %v79
    %v183 = vunpack.c.l.b16 %v80
    %v184 = vunpack.c.h.b16 %v80
    %v185 = vunpack.c.l.b16 %v81
    %v186 = vunpack.c.h.b16 %v81
    %v187 = vunpack.c.l.b16 %v82
    %v188 = vunpack.c.h.b16 %v82
    %v189 = vpack.c.b16 %v129, %v125
    %v190 = vpack.c.b16 %v130, %v126
    %v191 = vpack.c.b16 %v131, %v127
    %v192 = vpack.c.b16 %v132, %v128
    %v193 = vpack.c.b16 %v137, %v133
    %v194 = vpack.c.b16 %v138, %v134
    %v195 = vpack.c.b16 %v139, %v135
    %v196 = vpack.c.b16 %v140, %v136
    %v197 = vpack.c.b16 %v145, %v141
    %v198 = vpack.c.b16 %v146, %v142
    %v199 = vpack.c.b16 %v147, %v143
    %v200 = vpack.c.b16 %v148, %v144
    %v201 = vpack.c.b16 %v153, %v149
    %v202 = vpack.c.b16 %v154, %v150
    %v203 = vpack.c.b16 %v155, %v151
    %v204 = vpack.c.b16 %v156, %v152
    %v205 = vpack.c.b16 %v161, %v157
    %v206 = vpack.c.b16 %v162, %v158
    %v207 = vpack.c.b16 %v163, %v159
    %v208 = vpack.c.b16 %v164, %v160
    %v209 = vpack.c.b16 %v169, %v165
    %v210 = vpack.c.b16 %v170, %v166
    %v211 = vpack.c.b16 %v171, %v167
    %v212 = vpack.c.b16 %v172, %v168
    %v213 = vpack.c.b16 %v177, %v173
    %v214 = vpack.c.b16 %v178, %v174
    %v215 = vpack.c.b16 %v179, %v175
    %v216 = vpack.c.b16 %v180, %v176
    %v217 = vpack.c.b16 %v185, %v181
    %v218 = vpack.c.b16 %v186, %v182
    %v219 = vpack.c.b16 %v187, %v183
    %v220 = vpack.c.b16 %v188, %v184
    %253 = vmatprep.subr.bf16.mxu0 %v190
    %254 = vmatpush1.bf16.msra.mxu0 %v189
    %255 = vmatprep.subr.bf16.mxu0 %v194
    %256 = vmatpush1.bf16.msra.mxu0 %v193
    %257 = vmatprep.subr.bf16.mxu0 %v198
    %258 = vmatpush1.bf16.msra.mxu0 %v197
    %259 = vmatprep.subr.bf16.mxu0 %v202
    %260 = vmatpush1.bf16.msra.mxu0 %v201
    %261 = vmatprep.subr.bf16.mxu0 %v206
    %262 = vmatpush1.bf16.msra.mxu0 %v205
    %263 = vmatprep.subr.bf16.mxu0 %v210
    %264 = vmatpush1.bf16.msra.mxu0 %v209
    %265 = vmatprep.subr.bf16.mxu0 %v214
    %266 = vmatpush1.bf16.msra.mxu0 %v213
    %267 = vmatprep.subr.bf16.mxu0 %v218
    %268 = vmatpush1.bf16.msra.mxu0 %v217
    %269 = vmatprep.subr.bf16.mxu0 0
    %270 = vmatpush1.bf16.msra.mxu0 0
    %271 = vmatprep.subr.bf16.mxu0 0
    %272 = vmatpush1.bf16.msra.mxu0 0
    %273 = vmatprep.subr.bf16.mxu0 0
    %274 = vmatpush1.bf16.msra.mxu0 0
    %275 = vmatprep.subr.bf16.mxu0 0
    %276 = vmatpush1.bf16.msra.mxu0 0
    %277 = vmatprep.subr.bf16.mxu0 0
    %278 = vmatpush1.bf16.msra.mxu0 0
    %279 = vmatprep.subr.bf16.mxu0 0
    %280 = vmatpush1.bf16.msra.mxu0 0
    %281 = vmatprep.subr.bf16.mxu0 0
    %282 = vmatpush1.bf16.msra.mxu0 0
    %283 = vmatprep.subr.bf16.mxu0 0
    %284 = vmatpush1.bf16.msra.mxu0 0
    %285 = vmatprep.mubr.bf16.mxu0 0
    %286 = vmatmul.mubr.bf16.gmra.mrb[0].mxu0 %v92
    %v287 = vpop.f32.mrb[0].mxu0
    %v288 = vadd.f32 0.0, %v287
    %v289 = vpop.f32.mrb[0].mxu0
    %v290 = vadd.f32 0.0, %v289
    %v291 = vpop.f32.mrb[0].mxu0
    %v292 = vpop.f32.mrb[0].mxu0
    %293 = vdwg.mxu0
    %294 = vmatprep.subr.bf16.mxu0 %v192
    %295 = vmatpush1.bf16.msra.mxu0 %v191
    %296 = vmatprep.subr.bf16.mxu0 %v196
    %297 = vmatpush1.bf16.msra.mxu0 %v195
    %298 = vmatprep.subr.bf16.mxu0 %v200
    %299 = vmatpush1.bf16.msra.mxu0 %v199
    %300 = vmatprep.subr.bf16.mxu0 %v204
    %301 = vmatpush1.bf16.msra.mxu0 %v203
    %302 = vmatprep.subr.bf16.mxu0 %v208
    %303 = vmatpush1.bf16.msra.mxu0 %v207
    %304 = vmatprep.subr.bf16.mxu0 %v212
    %305 = vmatpush1.bf16.msra.mxu0 %v211
    %306 = vmatprep.subr.bf16.mxu0 %v216
    %307 = vmatpush1.bf16.msra.mxu0 %v215
    %308 = vmatprep.subr.bf16.mxu0 %v220
    %309 = vmatpush1.bf16.msra.mxu0 %v219
    %310 = vmatprep.subr.bf16.mxu0 0
    %311 = vmatpush1.bf16.msra.mxu0 0
    %312 = vmatprep.subr.bf16.mxu0 0
    %313 = vmatpush1.bf16.msra.mxu0 0
    %314 = vmatprep.subr.bf16.mxu0 0
    %315 = vmatpush1.bf16.msra.mxu0 0
    %316 = vmatprep.subr.bf16.mxu0 0
    %317 = vmatpush1.bf16.msra.mxu0 0
    %318 = vmatprep.subr.bf16.mxu0 0
    %319 = vmatpush1.bf16.msra.mxu0 0
    %320 = vmatprep.subr.bf16.mxu0 0
    %321 = vmatpush1.bf16.msra.mxu0 0
    %322 = vmatprep.subr.bf16.mxu0 0
    %323 = vmatpush1.bf16.msra.mxu0 0
    %324 = vmatprep.subr.bf16.mxu0 0
    %325 = vmatpush1.bf16.msra.mxu0 0
    %326 = vmatprep.mubr.bf16.mxu0 0
    %327 = vmatmul.mubr.bf16.gmra.mrb[0].mxu0 %v92
    %v328 = vpop.f32.mrb[0].mxu0
    %v329 = vadd.f32 0.0, %v328
    %v330 = vpop.f32.mrb[0].mxu0
    %v331 = vadd.f32 0.0, %v330
    %v332 = vpop.f32.mrb[0].mxu0
    %v333 = vpop.f32.mrb[0].mxu0
    %334 = vdwg.mxu0
    %v335 = vadd.f32 %v88, %v288
    %v336 = vadd.f32 %v89, %v290
    %v337 = vadd.f32 %v90, %v329
    %v338 = vadd.f32 %v91, %v331
    %v339 = vxor.u32 %v335, 2147483648
    %v340 = vmul.f32 %v339, 1.442695
    %v341 = vpow.pop %v340
    %v342 = vadd.f32 %v341, 1.0
    %v343 = vrcp.pop %v342
    %v344 = vmul.f32 1.0, %v343
    %v345 = vxor.u32 %v336, 2147483648
    %v346 = vmul.f32 %v345, 1.442695
    %v347 = vpow.pop %v346
    %v348 = vadd.f32 %v347, 1.0
    %v349 = vrcp.pop %v348
    %v350 = vmul.f32 1.0, %v349
    %v351 = vtanh.pop %v337
    %v352 = vxor.u32 %v338, 2147483648
    %v353 = vmul.f32 %v352, 1.442695
    %v354 = vpow.pop %v353
    %v355 = vadd.f32 %v354, 1.0
    %v356 = vrcp.pop %v355
    %v357 = vmul.f32 1.0, %v356
    %v358 = vmul.f32 %v350, %v85
    %v359 = vmul.f32 %v344, %v351
    %v360 = vadd.f32 %v358, %v359
    %v361 = vtanh.pop %v360
    %v362 = vmul.f32 %v357, %v361
    %v363 = vstv %s83
    %vm364 = vcmp.lt.s32.totalorder %v363, %v50
    %v365 = vsel %vm364, 1, 0
    %366 = vset.pattern.permute.xlu0 0
    %367 = vperm.xlu0 %366, %v365
    %v368 = vpop.permute.xlu0 %367
    %vm369 = vcmp.eq.s32.totalorder %v368, 1
    %v370 = vsel %vm369, %v362, %v84
    %v371 = vsel %vm369, %v360, %v85
    %s372 = scalar_lea.vmem [#allocation3], 16
    %v373 = vld [vmem:[%s372] sm:$0xff]
    %v374 = vld [vmem:[%s372 + $0x8] sm:$0xff]
    %v375 = vunpack.c.l.bf16 %v373
    %v376 = vunpack.c.h.bf16 %v373
    %v377 = vunpack.c.l.bf16 %v374
    %v378 = vunpack.c.h.bf16 %v374
    %v379 = vpack.c.bf16 %v370, %v370
    %380 = vmatprep.subr.bf16.mxu0 %v190
    %381 = vmatpush1.bf16.msra.mxu0 %v189
    %382 = vmatprep.subr.bf16.mxu0 %v194
    %383 = vmatpush1.bf16.msra.mxu0 %v193
    %384 = vmatprep.subr.bf16.mxu0 %v198
    %385 = vmatpush1.bf16.msra.mxu0 %v197
    %386 = vmatprep.subr.bf16.mxu0 %v202
    %387 = vmatpush1.bf16.msra.mxu0 %v201
    %388 = vmatprep.subr.bf16.mxu0 %v206
    %389 = vmatpush1.bf16.msra.mxu0 %v205
    %390 = vmatprep.subr.bf16.mxu0 %v210
    %391 = vmatpush1.bf16.msra.mxu0 %v209
    %392 = vmatprep.subr.bf16.mxu0 %v214
    %393 = vmatpush1.bf16.msra.mxu0 %v213
    %394 = vmatprep.subr.bf16.mxu0 %v218
    %395 = vmatpush1.bf16.msra.mxu0 %v217
    %396 = vmatprep.subr.bf16.mxu0 0
    %397 = vmatpush1.bf16.msra.mxu0 0
    %398 = vmatprep.subr.bf16.mxu0 0
    %399 = vmatpush1.bf16.msra.mxu0 0
    %400 = vmatprep.subr.bf16.mxu0 0
    %401 = vmatpush1.bf16.msra.mxu0 0
    %402 = vmatprep.subr.bf16.mxu0 0
    %403 = vmatpush1.bf16.msra.mxu0 0
    %404 = vmatprep.subr.bf16.mxu0 0
    %405 = vmatpush1.bf16.msra.mxu0 0
    %406 = vmatprep.subr.bf16.mxu0 0
    %407 = vmatpush1.bf16.msra.mxu0 0
    %408 = vmatprep.subr.bf16.mxu0 0
    %409 = vmatpush1.bf16.msra.mxu0 0
    %410 = vmatprep.subr.bf16.mxu0 0
    %411 = vmatpush1.bf16.msra.mxu0 0
    %412 = vmatprep.mubr.bf16.mxu0 0
    %413 = vmatmul.mubr.bf16.gmra.mrb[0].mxu0 %v379
    %v414 = vpop.f32.mrb[0].mxu0
    %v415 = vadd.f32 0.0, %v414
    %v416 = vpop.f32.mrb[0].mxu0
    %v417 = vadd.f32 0.0, %v416
    %v418 = vpop.f32.mrb[0].mxu0
    %v419 = vpop.f32.mrb[0].mxu0
    %420 = vdwg.mxu0
    %421 = vmatprep.subr.bf16.mxu0 %v192
    %422 = vmatpush1.bf16.msra.mxu0 %v191
    %423 = vmatprep.subr.bf16.mxu0 %v196
    %424 = vmatpush1.bf16.msra.mxu0 %v195
    %425 = vmatprep.subr.bf16.mxu0 %v200
    %426 = vmatpush1.bf16.msra.mxu0 %v199
    %427 = vmatprep.subr.bf16.mxu0 %v204
    %428 = vmatpush1.bf16.msra.mxu0 %v203
    %429 = vmatprep.subr.bf16.mxu0 %v208
    %430 = vmatpush1.bf16.msra.mxu0 %v207
    %431 = vmatprep.subr.bf16.mxu0 %v212
    %432 = vmatpush1.bf16.msra.mxu0 %v211
    %433 = vmatprep.subr.bf16.mxu0 %v216
    %434 = vmatpush1.bf16.msra.mxu0 %v215
    %435 = vmatprep.subr.bf16.mxu0 %v220
    %436 = vmatpush1.bf16.msra.mxu0 %v219
    %437 = vmatprep.subr.bf16.mxu0 0
    %438 = vmatpush1.bf16.msra.mxu0 0
    %439 = vmatprep.subr.bf16.mxu0 0
    %440 = vmatpush1.bf16.msra.mxu0 0
    %441 = vmatprep.subr.bf16.mxu0 0
    %442 = vmatpush1.bf16.msra.mxu0 0
    %443 = vmatprep.subr.bf16.mxu0 0
    %444 = vmatpush1.bf16.msra.mxu0 0
    %445 = vmatprep.subr.bf16.mxu0 0
    %446 = vmatpush1.bf16.msra.mxu0 0
    %447 = vmatprep.subr.bf16.mxu0 0
    %448 = vmatpush1.bf16.msra.mxu0 0
    %449 = vmatprep.subr.bf16.mxu0 0
    %450 = vmatpush1.bf16.msra.mxu0 0
    %451 = vmatprep.subr.bf16.mxu0 0
    %452 = vmatpush1.bf16.msra.mxu0 0
    %453 = vmatprep.mubr.bf16.mxu0 0
    %454 = vmatmul.mubr.bf16.gmra.mrb[0].mxu0 %v379
    %v455 = vpop.f32.mrb[0].mxu0
    %v456 = vadd.f32 0.0, %v455
    %v457 = vpop.f32.mrb[0].mxu0
    %v458 = vadd.f32 0.0, %v457
    %v459 = vpop.f32.mrb[0].mxu0
    %v460 = vpop.f32.mrb[0].mxu0
    %461 = vdwg.mxu0
    %v462 = vadd.f32 %v375, %v415
    %v463 = vadd.f32 %v376, %v417
    %v464 = vadd.f32 %v377, %v456
    %v465 = vadd.f32 %v378, %v458
    %v466 = vxor.u32 %v462, 2147483648
    %v467 = vmul.f32 %v466, 1.442695
    %v468 = vpow.pop %v467
    %v469 = vadd.f32 %v468, 1.0
    %v470 = vrcp.pop %v469
    %v471 = vmul.f32 1.0, %v470
    %v472 = vxor.u32 %v463, 2147483648
    %v473 = vmul.f32 %v472, 1.442695
    %v474 = vpow.pop %v473
    %v475 = vadd.f32 %v474, 1.0
    %v476 = vrcp.pop %v475
    %v477 = vmul.f32 1.0, %v476
    %v478 = vtanh.pop %v464
    %v479 = vxor.u32 %v465, 2147483648
    %v480 = vmul.f32 %v479, 1.442695
    %v481 = vpow.pop %v480
    %v482 = vadd.f32 %v481, 1.0
    %v483 = vrcp.pop %v482
    %v484 = vmul.f32 1.0, %v483
    %v485 = vmul.f32 %v477, %v371
    %v486 = vmul.f32 %v471, %v478
    %v487 = vadd.f32 %v485, %v486
    %v488 = vtanh.pop %v487
    %v489 = vmul.f32 %v484, %v488
    %s490 = sadd.s32 %s83, 1
    %v491 = vstv %s490
    %vm492 = vcmp.lt.s32.totalorder %v491, %v50
    %v493 = vsel %vm492, 1, 0
    %494 = vset.pattern.permute.xlu0 0
    %495 = vperm.xlu0 %494, %v493
    %v496 = vpop.permute.xlu0 %495
    %vm497 = vcmp.eq.s32.totalorder %v496, 1
    %v498 = vsel %vm497, %v489, %v370
    %v499 = vsel %vm497, %v487, %v371
    %s500 = scalar_lea.vmem [#allocation3], 32
    %v501 = vld [vmem:[%s500] sm:$0xff]
    %v502 = vld [vmem:[%s500 + $0x8] sm:$0xff]
    %v503 = vunpack.c.l.bf16 %v501
    %v504 = vunpack.c.h.bf16 %v501
    %v505 = vunpack.c.l.bf16 %v502
    %v506 = vunpack.c.h.bf16 %v502
    %v507 = vpack.c.bf16 %v498, %v498
    %508 = vmatprep.subr.bf16.mxu0 %v190
    %509 = vmatpush1.bf16.msra.mxu0 %v189
    %510 = vmatprep.subr.bf16.mxu0 %v194
    %511 = vmatpush1.bf16.msra.mxu0 %v193
    %512 = vmatprep.subr.bf16.mxu0 %v198
    %513 = vmatpush1.bf16.msra.mxu0 %v197
    %514 = vmatprep.subr.bf16.mxu0 %v202
    %515 = vmatpush1.bf16.msra.mxu0 %v201
    %516 = vmatprep.subr.bf16.mxu0 %v206
    %517 = vmatpush1.bf16.msra.mxu0 %v205
    %518 = vmatprep.subr.bf16.mxu0 %v210
    %519 = vmatpush1.bf16.msra.mxu0 %v209
    %520 = vmatprep.subr.bf16.mxu0 %v214
    %521 = vmatpush1.bf16.msra.mxu0 %v213
    %522 = vmatprep.subr.bf16.mxu0 %v218
    %523 = vmatpush1.bf16.msra.mxu0 %v217
    %524 = vmatprep.subr.bf16.mxu0 0
    %525 = vmatpush1.bf16.msra.mxu0 0
    %526 = vmatprep.subr.bf16.mxu0 0
    %527 = vmatpush1.bf16.msra.mxu0 0
    %528 = vmatprep.subr.bf16.mxu0 0
    %529 = vmatpush1.bf16.msra.mxu0 0
    %530 = vmatprep.subr.bf16.mxu0 0
    %531 = vmatpush1.bf16.msra.mxu0 0
    %532 = vmatprep.subr.bf16.mxu0 0
    %533 = vmatpush1.bf16.msra.mxu0 0
    %534 = vmatprep.subr.bf16.mxu0 0
    %535 = vmatpush1.bf16.msra.mxu0 0
    %536 = vmatprep.subr.bf16.mxu0 0
    %537 = vmatpush1.bf16.msra.mxu0 0
    %538 = vmatprep.subr.bf16.mxu0 0
    %539 = vmatpush1.bf16.msra.mxu0 0
    %540 = vmatprep.mubr.bf16.mxu0 0
    %541 = vmatmul.mubr.bf16.gmra.mrb[0].mxu0 %v507
    %v542 = vpop.f32.mrb[0].mxu0
    %v543 = vadd.f32 0.0, %v542
    %v544 = vpop.f32.mrb[0].mxu0
    %v545 = vadd.f32 0.0, %v544
    %v546 = vpop.f32.mrb[0].mxu0
    %v547 = vpop.f32.mrb[0].mxu0
    %548 = vdwg.mxu0
    %549 = vmatprep.subr.bf16.mxu0 %v192
    %550 = vmatpush1.bf16.msra.mxu0 %v191
    %551 = vmatprep.subr.bf16.mxu0 %v196
    %552 = vmatpush1.bf16.msra.mxu0 %v195
    %553 = vmatprep.subr.bf16.mxu0 %v200
    %554 = vmatpush1.bf16.msra.mxu0 %v199
    %555 = vmatprep.subr.bf16.mxu0 %v204
    %556 = vmatpush1.bf16.msra.mxu0 %v203
    %557 = vmatprep.subr.bf16.mxu0 %v208
    %558 = vmatpush1.bf16.msra.mxu0 %v207
    %559 = vmatprep.subr.bf16.mxu0 %v212
    %560 = vmatpush1.bf16.msra.mxu0 %v211
    %561 = vmatprep.subr.bf16.mxu0 %v216
    %562 = vmatpush1.bf16.msra.mxu0 %v215
    %563 = vmatprep.subr.bf16.mxu0 %v220
    %564 = vmatpush1.bf16.msra.mxu0 %v219
    %565 = vmatprep.subr.bf16.mxu0 0
    %566 = vmatpush1.bf16.msra.mxu0 0
    %567 = vmatprep.subr.bf16.mxu0 0
    %568 = vmatpush1.bf16.msra.mxu0 0
    %569 = vmatprep.subr.bf16.mxu0 0
    %570 = vmatpush1.bf16.msra.mxu0 0
    %571 = vmatprep.subr.bf16.mxu0 0
    %572 = vmatpush1.bf16.msra.mxu0 0
    %573 = vmatprep.subr.bf16.mxu0 0
    %574 = vmatpush1.bf16.msra.mxu0 0
    %575 = vmatprep.subr.bf16.mxu0 0
    %576 = vmatpush1.bf16.msra.mxu0 0
    %577 = vmatprep.subr.bf16.mxu0 0
    %578 = vmatpush1.bf16.msra.mxu0 0
    %579 = vmatprep.subr.bf16.mxu0 0
    %580 = vmatpush1.bf16.msra.mxu0 0
    %581 = vmatprep.mubr.bf16.mxu0 0
    %582 = vmatmul.mubr.bf16.gmra.mrb[0].mxu0 %v507
    %v583 = vpop.f32.mrb[0].mxu0
    %v584 = vadd.f32 0.0, %v583
    %v585 = vpop.f32.mrb[0].mxu0
    %v586 = vadd.f32 0.0, %v585
    %v587 = vpop.f32.mrb[0].mxu0
    %v588 = vpop.f32.mrb[0].mxu0
    %589 = vdwg.mxu0
    %v590 = vadd.f32 %v503, %v543
    %v591 = vadd.f32 %v504, %v545
    %v592 = vadd.f32 %v505, %v584
    %v593 = vadd.f32 %v506, %v586
    %v594 = vxor.u32 %v590, 2147483648
    %v595 = vmul.f32 %v594, 1.442695
    %v596 = vpow.pop %v595
    %v597 = vadd.f32 %v596, 1.0
    %v598 = vrcp.pop %v597
    %v599 = vmul.f32 1.0, %v598
    %v600 = vxor.u32 %v591, 2147483648
    %v601 = vmul.f32 %v600, 1.442695
    %v602 = vpow.pop %v601
    %v603 = vadd.f32 %v602, 1.0
    %v604 = vrcp.pop %v603
    %v605 = vmul.f32 1.0, %v604
    %v606 = vtanh.pop %v592
    %v607 = vxor.u32 %v593, 2147483648
    %v608 = vmul.f32 %v607, 1.442695
    %v609 = vpow.pop %v608
    %v610 = vadd.f32 %v609, 1.0
    %v611 = vrcp.pop %v610
    %v612 = vmul.f32 1.0, %v611
    %v613 = vmul.f32 %v605, %v499
    %v614 = vmul.f32 %v599, %v606
    %v615 = vadd.f32 %v613, %v614
    %v616 = vtanh.pop %v615
    %v617 = vmul.f32 %v612, %v616
    %s618 = sadd.s32 %s83, 2
    %v619 = vstv %s618
    %vm620 = vcmp.lt.s32.totalorder %v619, %v50
    %v621 = vsel %vm620, 1, 0
    %622 = vset.pattern.permute.xlu0 0
    %623 = vperm.xlu0 %622, %v621
    %v624 = vpop.permute.xlu0 %623
    %vm625 = vcmp.eq.s32.totalorder %v624, 1
    %v626 = vsel %vm625, %v617, %v498
    %v627 = vsel %vm625, %v615, %v499
    %s628 = scalar_lea.vmem [#allocation3], 48
    %v629 = vld [vmem:[%s628] sm:$0xff]
    %v630 = vld [vmem:[%s628 + $0x8] sm:$0xff]
    %v631 = vunpack.c.l.bf16 %v629
    %v632 = vunpack.c.h.bf16 %v629
    %v633 = vunpack.c.l.bf16 %v630
    %v634 = vunpack.c.h.bf16 %v630
    %v635 = vpack.c.bf16 %v626, %v626
    %636 = vmatprep.subr.bf16.mxu0 %v190
    %637 = vmatpush1.bf16.msra.mxu0 %v189
    %638 = vmatprep.subr.bf16.mxu0 %v194
    %639 = vmatpush1.bf16.msra.mxu0 %v193
    %640 = vmatprep.subr.bf16.mxu0 %v198
    %641 = vmatpush1.bf16.msra.mxu0 %v197
    %642 = vmatprep.subr.bf16.mxu0 %v202
    %643 = vmatpush1.bf16.msra.mxu0 %v201
    %644 = vmatprep.subr.bf16.mxu0 %v206
    %645 = vmatpush1.bf16.msra.mxu0 %v205
    %646 = vmatprep.subr.bf16.mxu0 %v210
    %647 = vmatpush1.bf16.msra.mxu0 %v209
    %648 = vmatprep.subr.bf16.mxu0 %v214
    %649 = vmatpush1.bf16.msra.mxu0 %v213
    %650 = vmatprep.subr.bf16.mxu0 %v218
    %651 = vmatpush1.bf16.msra.mxu0 %v217
    %652 = vmatprep.subr.bf16.mxu0 0
    %653 = vmatpush1.bf16.msra.mxu0 0
    %654 = vmatprep.subr.bf16.mxu0 0
    %655 = vmatpush1.bf16.msra.mxu0 0
    %656 = vmatprep.subr.bf16.mxu0 0
    %657 = vmatpush1.bf16.msra.mxu0 0
    %658 = vmatprep.subr.bf16.mxu0 0
    %659 = vmatpush1.bf16.msra.mxu0 0
    %660 = vmatprep.subr.bf16.mxu0 0
    %661 = vmatpush1.bf16.msra.mxu0 0
    %662 = vmatprep.subr.bf16.mxu0 0
    %663 = vmatpush1.bf16.msra.mxu0 0
    %664 = vmatprep.subr.bf16.mxu0 0
    %665 = vmatpush1.bf16.msra.mxu0 0
    %666 = vmatprep.subr.bf16.mxu0 0
    %667 = vmatpush1.bf16.msra.mxu0 0
    %668 = vmatprep.mubr.bf16.mxu0 0
    %669 = vmatmul.mubr.bf16.gmra.mrb[0].mxu0 %v635
    %v670 = vpop.f32.mrb[0].mxu0
    %v671 = vadd.f32 0.0, %v670
    %v672 = vpop.f32.mrb[0].mxu0
    %v673 = vadd.f32 0.0, %v672
    %v674 = vpop.f32.mrb[0].mxu0
    %v675 = vpop.f32.mrb[0].mxu0
    %676 = vdwg.mxu0
    %677 = vmatprep.subr.bf16.mxu0 %v192
    %678 = vmatpush1.bf16.msra.mxu0 %v191
    %679 = vmatprep.subr.bf16.mxu0 %v196
    %680 = vmatpush1.bf16.msra.mxu0 %v195
    %681 = vmatprep.subr.bf16.mxu0 %v200
    %682 = vmatpush1.bf16.msra.mxu0 %v199
    %683 = vmatprep.subr.bf16.mxu0 %v204
    %684 = vmatpush1.bf16.msra.mxu0 %v203
    %685 = vmatprep.subr.bf16.mxu0 %v208
    %686 = vmatpush1.bf16.msra.mxu0 %v207
    %687 = vmatprep.subr.bf16.mxu0 %v212
    %688 = vmatpush1.bf16.msra.mxu0 %v211
    %689 = vmatprep.subr.bf16.mxu0 %v216
    %690 = vmatpush1.bf16.msra.mxu0 %v215
    %691 = vmatprep.subr.bf16.mxu0 %v220
    %692 = vmatpush1.bf16.msra.mxu0 %v219
    %693 = vmatprep.subr.bf16.mxu0 0
    %694 = vmatpush1.bf16.msra.mxu0 0
    %695 = vmatprep.subr.bf16.mxu0 0
    %696 = vmatpush1.bf16.msra.mxu0 0
    %697 = vmatprep.subr.bf16.mxu0 0
    %698 = vmatpush1.bf16.msra.mxu0 0
    %699 = vmatprep.subr.bf16.mxu0 0
    %700 = vmatpush1.bf16.msra.mxu0 0
    %701 = vmatprep.subr.bf16.mxu0 0
    %702 = vmatpush1.bf16.msra.mxu0 0
    %703 = vmatprep.subr.bf16.mxu0 0
    %704 = vmatpush1.bf16.msra.mxu0 0
    %705 = vmatprep.subr.bf16.mxu0 0
    %706 = vmatpush1.bf16.msra.mxu0 0
    %707 = vmatprep.subr.bf16.mxu0 0
    %708 = vmatpush1.bf16.msra.mxu0 0
    %709 = vmatprep.mubr.bf16.mxu0 0
    %710 = vmatmul.mubr.bf16.gmra.mrb[0].mxu0 %v635
    %v711 = vpop.f32.mrb[0].mxu0
    %v712 = vadd.f32 0.0, %v711
    %v713 = vpop.f32.mrb[0].mxu0
    %v714 = vadd.f32 0.0, %v713
    %v715 = vpop.f32.mrb[0].mxu0
    %v716 = vpop.f32.mrb[0].mxu0
    %717 = vdwg.mxu0
    %v718 = vadd.f32 %v631, %v671
    %v719 = vadd.f32 %v632, %v673
    %v720 = vadd.f32 %v633, %v712
    %v721 = vadd.f32 %v634, %v714
    %v722 = vxor.u32 %v718, 2147483648
    %v723 = vmul.f32 %v722, 1.442695
    %v724 = vpow.pop %v723
    %v725 = vadd.f32 %v724, 1.0
    %v726 = vrcp.pop %v725
    %v727 = vmul.f32 1.0, %v726
    %v728 = vxor.u32 %v719, 2147483648
    %v729 = vmul.f32 %v728, 1.442695
    %v730 = vpow.pop %v729
    %v731 = vadd.f32 %v730, 1.0
    %v732 = vrcp.pop %v731
    %v733 = vmul.f32 1.0, %v732
    %v734 = vtanh.pop %v720
    %v735 = vxor.u32 %v721, 2147483648
    %v736 = vmul.f32 %v735, 1.442695
    %v737 = vpow.pop %v736
    %v738 = vadd.f32 %v737, 1.0
    %v739 = vrcp.pop %v738
    %v740 = vmul.f32 1.0, %v739
    %v741 = vmul.f32 %v733, %v627
    %v742 = vmul.f32 %v727, %v734
    %v743 = vadd.f32 %v741, %v742
    %v744 = vtanh.pop %v743
    %v745 = vmul.f32 %v740, %v744
    %s746 = sadd.s32 %s83, 3
    %v747 = vstv %s746
    %vm748 = vcmp.lt.s32.totalorder %v747, %v50
    %v749 = vsel %vm748, 1, 0
    %750 = vset.pattern.permute.xlu0 0
    %751 = vperm.xlu0 %750, %v749
    %v752 = vpop.permute.xlu0 %751
    %vm753 = vcmp.eq.s32.totalorder %v752, 1
    %v754 = vsel %vm753, %v745, %v626
    %v755 = vsel %vm753, %v743, %v627
    %s756 = scalar_lea.vmem [#allocation3], 64
    %v757 = vld [vmem:[%s756] sm:$0xff]
    %v758 = vld [vmem:[%s756 + $0x8] sm:$0xff]
    %v759 = vunpack.c.l.bf16 %v757
    %v760 = vunpack.c.h.bf16 %v757
    %v761 = vunpack.c.l.bf16 %v758
    %v762 = vunpack.c.h.bf16 %v758
    %v763 = vpack.c.bf16 %v754, %v754
    %764 = vmatprep.subr.bf16.mxu0 %v190
    %765 = vmatpush1.bf16.msra.mxu0 %v189
    %766 = vmatprep.subr.bf16.mxu0 %v194
    %767 = vmatpush1.bf16.msra.mxu0 %v193
    %768 = vmatprep.subr.bf16.mxu0 %v198
    %769 = vmatpush1.bf16.msra.mxu0 %v197
    %770 = vmatprep.subr.bf16.mxu0 %v202
    %771 = vmatpush1.bf16.msra.mxu0 %v201
    %772 = vmatprep.subr.bf16.mxu0 %v206
    %773 = vmatpush1.bf16.msra.mxu0 %v205
    %774 = vmatprep.subr.bf16.mxu0 %v210
    %775 = vmatpush1.bf16.msra.mxu0 %v209
    %776 = vmatprep.subr.bf16.mxu0 %v214
    %777 = vmatpush1.bf16.msra.mxu0 %v213
    %778 = vmatprep.subr.bf16.mxu0 %v218
    %779 = vmatpush1.bf16.msra.mxu0 %v217
    %780 = vmatprep.subr.bf16.mxu0 0
    %781 = vmatpush1.bf16.msra.mxu0 0
    %782 = vmatprep.subr.bf16.mxu0 0
    %783 = vmatpush1.bf16.msra.mxu0 0
    %784 = vmatprep.subr.bf16.mxu0 0
    %785 = vmatpush1.bf16.msra.mxu0 0
    %786 = vmatprep.subr.bf16.mxu0 0
    %787 = vmatpush1.bf16.msra.mxu0 0
    %788 = vmatprep.subr.bf16.mxu0 0
    %789 = vmatpush1.bf16.msra.mxu0 0
    %790 = vmatprep.subr.bf16.mxu0 0
    %791 = vmatpush1.bf16.msra.mxu0 0
    %792 = vmatprep.subr.bf16.mxu0 0
    %793 = vmatpush1.bf16.msra.mxu0 0
    %794 = vmatprep.subr.bf16.mxu0 0
    %795 = vmatpush1.bf16.msra.mxu0 0
    %796 = vmatprep.mubr.bf16.mxu0 0
    %797 = vmatmul.mubr.bf16.gmra.mrb[0].mxu0 %v763
    %v798 = vpop.f32.mrb[0].mxu0
    %v799 = vadd.f32 0.0, %v798
    %v800 = vpop.f32.mrb[0].mxu0
    %v801 = vadd.f32 0.0, %v800
    %v802 = vpop.f32.mrb[0].mxu0
    %v803 = vpop.f32.mrb[0].mxu0
    %804 = vdwg.mxu0
    %805 = vmatprep.subr.bf16.mxu0 %v192
    %806 = vmatpush1.bf16.msra.mxu0 %v191
    %807 = vmatprep.subr.bf16.mxu0 %v196
    %808 = vmatpush1.bf16.msra.mxu0 %v195
    %809 = vmatprep.subr.bf16.mxu0 %v200
    %810 = vmatpush1.bf16.msra.mxu0 %v199
    %811 = vmatprep.subr.bf16.mxu0 %v204
    %812 = vmatpush1.bf16.msra.mxu0 %v203
    %813 = vmatprep.subr.bf16.mxu0 %v208
    %814 = vmatpush1.bf16.msra.mxu0 %v207
    %815 = vmatprep.subr.bf16.mxu0 %v212
    %816 = vmatpush1.bf16.msra.mxu0 %v211
    %817 = vmatprep.subr.bf16.mxu0 %v216
    %818 = vmatpush1.bf16.msra.mxu0 %v215
    %819 = vmatprep.subr.bf16.mxu0 %v220
    %820 = vmatpush1.bf16.msra.mxu0 %v219
    %821 = vmatprep.subr.bf16.mxu0 0
    %822 = vmatpush1.bf16.msra.mxu0 0
    %823 = vmatprep.subr.bf16.mxu0 0
    %824 = vmatpush1.bf16.msra.mxu0 0
    %825 = vmatprep.subr.bf16.mxu0 0
    %826 = vmatpush1.bf16.msra.mxu0 0
    %827 = vmatprep.subr.bf16.mxu0 0
    %828 = vmatpush1.bf16.msra.mxu0 0
    %829 = vmatprep.subr.bf16.mxu0 0
    %830 = vmatpush1.bf16.msra.mxu0 0
    %831 = vmatprep.subr.bf16.mxu0 0
    %832 = vmatpush1.bf16.msra.mxu0 0
    %833 = vmatprep.subr.bf16.mxu0 0
    %834 = vmatpush1.bf16.msra.mxu0 0
    %835 = vmatprep.subr.bf16.mxu0 0
    %836 = vmatpush1.bf16.msra.mxu0 0
    %837 = vmatprep.mubr.bf16.mxu0 0
    %838 = vmatmul.mubr.bf16.gmra.mrb[0].mxu0 %v763
    %v839 = vpop.f32.mrb[0].mxu0
    %v840 = vadd.f32 0.0, %v839
    %v841 = vpop.f32.mrb[0].mxu0
    %v842 = vadd.f32 0.0, %v841
    %v843 = vpop.f32.mrb[0].mxu0
    %v844 = vpop.f32.mrb[0].mxu0
    %845 = vdwg.mxu0
    %v846 = vadd.f32 %v759, %v799
    %v847 = vadd.f32 %v760, %v801
    %v848 = vadd.f32 %v761, %v840
    %v849 = vadd.f32 %v762, %v842
    %v850 = vxor.u32 %v846, 2147483648
    %v851 = vmul.f32 %v850, 1.442695
    %v852 = vpow.pop %v851
    %v853 = vadd.f32 %v852, 1.0
    %v854 = vrcp.pop %v853
    %v855 = vmul.f32 1.0, %v854
    %v856 = vxor.u32 %v847, 2147483648
    %v857 = vmul.f32 %v856, 1.442695
    %v858 = vpow.pop %v857
    %v859 = vadd.f32 %v858, 1.0
    %v860 = vrcp.pop %v859
    %v861 = vmul.f32 1.0, %v860
    %v862 = vtanh.pop %v848
    %v863 = vxor.u32 %v849, 2147483648
    %v864 = vmul.f32 %v863, 1.442695
    %v865 = vpow.pop %v864
    %v866 = vadd.f32 %v865, 1.0
    %v867 = vrcp.pop %v866
    %v868 = vmul.f32 1.0, %v867
    %v869 = vmul.f32 %v861, %v755
    %v870 = vmul.f32 %v855, %v862
    %v871 = vadd.f32 %v869, %v870
    %v872 = vtanh.pop %v871
    %v873 = vmul.f32 %v868, %v872
    %s874 = sadd.s32 %s83, 4
    %v875 = vstv %s874
    %vm876 = vcmp.lt.s32.totalorder %v875, %v50
    %v877 = vsel %vm876, 1, 0
    %878 = vset.pattern.permute.xlu0 0
    %879 = vperm.xlu0 %878, %v877
    %v880 = vpop.permute.xlu0 %879
    %vm881 = vcmp.eq.s32.totalorder %v880, 1
    %v882 = vsel %vm881, %v873, %v754
    %v883 = vsel %vm881, %v871, %v755
    %s884 = scalar_lea.vmem [#allocation3], 80
    %v885 = vld [vmem:[%s884] sm:$0xff]
    %v886 = vld [vmem:[%s884 + $0x8] sm:$0xff]
    %v887 = vunpack.c.l.bf16 %v885
    %v888 = vunpack.c.h.bf16 %v885
    %v889 = vunpack.c.l.bf16 %v886
    %v890 = vunpack.c.h.bf16 %v886
    %v891 = vpack.c.bf16 %v882, %v882
    %892 = vmatprep.subr.bf16.mxu0 %v190
    %893 = vmatpush1.bf16.msra.mxu0 %v189
    %894 = vmatprep.subr.bf16.mxu0 %v194
    %895 = vmatpush1.bf16.msra.mxu0 %v193
    %896 = vmatprep.subr.bf16.mxu0 %v198
    %897 = vmatpush1.bf16.msra.mxu0 %v197
    %898 = vmatprep.subr.bf16.mxu0 %v202
    %899 = vmatpush1.bf16.msra.mxu0 %v201
    %900 = vmatprep.subr.bf16.mxu0 %v206
    %901 = vmatpush1.bf16.msra.mxu0 %v205
    %902 = vmatprep.subr.bf16.mxu0 %v210
    %903 = vmatpush1.bf16.msra.mxu0 %v209
    %904 = vmatprep.subr.bf16.mxu0 %v214
    %905 = vmatpush1.bf16.msra.mxu0 %v213
    %906 = vmatprep.subr.bf16.mxu0 %v218
    %907 = vmatpush1.bf16.msra.mxu0 %v217
    %908 = vmatprep.subr.bf16.mxu0 0
    %909 = vmatpush1.bf16.msra.mxu0 0
    %910 = vmatprep.subr.bf16.mxu0 0
    %911 = vmatpush1.bf16.msra.mxu0 0
    %912 = vmatprep.subr.bf16.mxu0 0
    %913 = vmatpush1.bf16.msra.mxu0 0
    %914 = vmatprep.subr.bf16.mxu0 0
    %915 = vmatpush1.bf16.msra.mxu0 0
    %916 = vmatprep.subr.bf16.mxu0 0
    %917 = vmatpush1.bf16.msra.mxu0 0
    %918 = vmatprep.subr.bf16.mxu0 0
    %919 = vmatpush1.bf16.msra.mxu0 0
    %920 = vmatprep.subr.bf16.mxu0 0
    %921 = vmatpush1.bf16.msra.mxu0 0
    %922 = vmatprep.subr.bf16.mxu0 0
    %923 = vmatpush1.bf16.msra.mxu0 0
    %924 = vmatprep.mubr.bf16.mxu0 0
    %925 = vmatmul.mubr.bf16.gmra.mrb[0].mxu0 %v891
    %v926 = vpop.f32.mrb[0].mxu0
    %v927 = vadd.f32 0.0, %v926
    %v928 = vpop.f32.mrb[0].mxu0
    %v929 = vadd.f32 0.0, %v928
    %v930 = vpop.f32.mrb[0].mxu0
    %v931 = vpop.f32.mrb[0].mxu0
    %932 = vdwg.mxu0
    %933 = vmatprep.subr.bf16.mxu0 %v192
    %934 = vmatpush1.bf16.msra.mxu0 %v191
    %935 = vmatprep.subr.bf16.mxu0 %v196
    %936 = vmatpush1.bf16.msra.mxu0 %v195
    %937 = vmatprep.subr.bf16.mxu0 %v200
    %938 = vmatpush1.bf16.msra.mxu0 %v199
    %939 = vmatprep.subr.bf16.mxu0 %v204
    %940 = vmatpush1.bf16.msra.mxu0 %v203
    %941 = vmatprep.subr.bf16.mxu0 %v208
    %942 = vmatpush1.bf16.msra.mxu0 %v207
    %943 = vmatprep.subr.bf16.mxu0 %v212
    %944 = vmatpush1.bf16.msra.mxu0 %v211
    %945 = vmatprep.subr.bf16.mxu0 %v216
    %946 = vmatpush1.bf16.msra.mxu0 %v215
    %947 = vmatprep.subr.bf16.mxu0 %v220
    %948 = vmatpush1.bf16.msra.mxu0 %v219
    %949 = vmatprep.subr.bf16.mxu0 0
    %950 = vmatpush1.bf16.msra.mxu0 0
    %951 = vmatprep.subr.bf16.mxu0 0
    %952 = vmatpush1.bf16.msra.mxu0 0
    %953 = vmatprep.subr.bf16.mxu0 0
    %954 = vmatpush1.bf16.msra.mxu0 0
    %955 = vmatprep.subr.bf16.mxu0 0
    %956 = vmatpush1.bf16.msra.mxu0 0
    %957 = vmatprep.subr.bf16.mxu0 0
    %958 = vmatpush1.bf16.msra.mxu0 0
    %959 = vmatprep.subr.bf16.mxu0 0
    %960 = vmatpush1.bf16.msra.mxu0 0
    %961 = vmatprep.subr.bf16.mxu0 0
    %962 = vmatpush1.bf16.msra.mxu0 0
    %963 = vmatprep.subr.bf16.mxu0 0
    %964 = vmatpush1.bf16.msra.mxu0 0
    %965 = vmatprep.mubr.bf16.mxu0 0
    %966 = vmatmul.mubr.bf16.gmra.mrb[0].mxu0 %v891
    %v967 = vpop.f32.mrb[0].mxu0
    %v968 = vadd.f32 0.0, %v967
    %v969 = vpop.f32.mrb[0].mxu0
    %v970 = vadd.f32 0.0, %v969
    %v971 = vpop.f32.mrb[0].mxu0
    %v972 = vpop.f32.mrb[0].mxu0
    %973 = vdwg.mxu0
    %v974 = vadd.f32 %v887, %v927
    %v975 = vadd.f32 %v888, %v929
    %v976 = vadd.f32 %v889, %v968
    %v977 = vadd.f32 %v890, %v970
    %v978 = vxor.u32 %v974, 2147483648
    %v979 = vmul.f32 %v978, 1.442695
    %v980 = vpow.pop %v979
    %v981 = vadd.f32 %v980, 1.0
    %v982 = vrcp.pop %v981
    %v983 = vmul.f32 1.0, %v982
    %v984 = vxor.u32 %v975, 2147483648
    %v985 = vmul.f32 %v984, 1.442695
    %v986 = vpow.pop %v985
    %v987 = vadd.f32 %v986, 1.0
    %v988 = vrcp.pop %v987
    %v989 = vmul.f32 1.0, %v988
    %v990 = vtanh.pop %v976
    %v991 = vxor.u32 %v977, 2147483648
    %v992 = vmul.f32 %v991, 1.442695
    %v993 = vpow.pop %v992
    %v994 = vadd.f32 %v993, 1.0
    %v995 = vrcp.pop %v994
    %v996 = vmul.f32 1.0, %v995
    %v997 = vmul.f32 %v989, %v883
    %v998 = vmul.f32 %v983, %v990
    %v999 = vadd.f32 %v997, %v998
    %v1000 = vtanh.pop %v999
    %v1001 = vmul.f32 %v996, %v1000
    %s1002 = sadd.s32 %s83, 5
    %v1003 = vstv %s1002
    %vm1004 = vcmp.lt.s32.totalorder %v1003, %v50
    %v1005 = vsel %vm1004, 1, 0
    %1006 = vset.pattern.permute.xlu0 0
    %1007 = vperm.xlu0 %1006, %v1005
    %v1008 = vpop.permute.xlu0 %1007
    %vm1009 = vcmp.eq.s32.totalorder %v1008, 1
    %v1010 = vsel %vm1009, %v1001, %v882
    %v1011 = vsel %vm1009, %v999, %v883
    %s1012 = scalar_lea.vmem [#allocation3], 96
    %v1013 = vld [vmem:[%s1012] sm:$0xff]
    %v1014 = vld [vmem:[%s1012 + $0x8] sm:$0xff]
    %v1015 = vunpack.c.l.bf16 %v1013
    %v1016 = vunpack.c.h.bf16 %v1013
    %v1017 = vunpack.c.l.bf16 %v1014
    %v1018 = vunpack.c.h.bf16 %v1014
    %v1019 = vpack.c.bf16 %v1010, %v1010
    %1020 = vmatprep.subr.bf16.mxu0 %v190
    %1021 = vmatpush1.bf16.msra.mxu0 %v189
    %1022 = vmatprep.subr.bf16.mxu0 %v194
    %1023 = vmatpush1.bf16.msra.mxu0 %v193
    %1024 = vmatprep.subr.bf16.mxu0 %v198
    %1025 = vmatpush1.bf16.msra.mxu0 %v197
    %1026 = vmatprep.subr.bf16.mxu0 %v202
    %1027 = vmatpush1.bf16.msra.mxu0 %v201
    %1028 = vmatprep.subr.bf16.mxu0 %v206
    %1029 = vmatpush1.bf16.msra.mxu0 %v205
    %1030 = vmatprep.subr.bf16.mxu0 %v210
    %1031 = vmatpush1.bf16.msra.mxu0 %v209
    %1032 = vmatprep.subr.bf16.mxu0 %v214
    %1033 = vmatpush1.bf16.msra.mxu0 %v213
    %1034 = vmatprep.subr.bf16.mxu0 %v218
    %1035 = vmatpush1.bf16.msra.mxu0 %v217
    %1036 = vmatprep.subr.bf16.mxu0 0
    %1037 = vmatpush1.bf16.msra.mxu0 0
    %1038 = vmatprep.subr.bf16.mxu0 0
    %1039 = vmatpush1.bf16.msra.mxu0 0
    %1040 = vmatprep.subr.bf16.mxu0 0
    %1041 = vmatpush1.bf16.msra.mxu0 0
    %1042 = vmatprep.subr.bf16.mxu0 0
    %1043 = vmatpush1.bf16.msra.mxu0 0
    %1044 = vmatprep.subr.bf16.mxu0 0
    %1045 = vmatpush1.bf16.msra.mxu0 0
    %1046 = vmatprep.subr.bf16.mxu0 0
    %1047 = vmatpush1.bf16.msra.mxu0 0
    %1048 = vmatprep.subr.bf16.mxu0 0
    %1049 = vmatpush1.bf16.msra.mxu0 0
    %1050 = vmatprep.subr.bf16.mxu0 0
    %1051 = vmatpush1.bf16.msra.mxu0 0
    %1052 = vmatprep.mubr.bf16.mxu0 0
    %1053 = vmatmul.mubr.bf16.gmra.mrb[0].mxu0 %v1019
    %v1054 = vpop.f32.mrb[0].mxu0
    %v1055 = vadd.f32 0.0, %v1054
    %v1056 = vpop.f32.mrb[0].mxu0
    %v1057 = vadd.f32 0.0, %v1056
    %v1058 = vpop.f32.mrb[0].mxu0
    %v1059 = vpop.f32.mrb[0].mxu0
    %1060 = vdwg.mxu0
    %1061 = vmatprep.subr.bf16.mxu0 %v192
    %1062 = vmatpush1.bf16.msra.mxu0 %v191
    %1063 = vmatprep.subr.bf16.mxu0 %v196
    %1064 = vmatpush1.bf16.msra.mxu0 %v195
    %1065 = vmatprep.subr.bf16.mxu0 %v200
    %1066 = vmatpush1.bf16.msra.mxu0 %v199
    %1067 = vmatprep.subr.bf16.mxu0 %v204
    %1068 = vmatpush1.bf16.msra.mxu0 %v203
    %1069 = vmatprep.subr.bf16.mxu0 %v208
    %1070 = vmatpush1.bf16.msra.mxu0 %v207
    %1071 = vmatprep.subr.bf16.mxu0 %v212
    %1072 = vmatpush1.bf16.msra.mxu0 %v211
    %1073 = vmatprep.subr.bf16.mxu0 %v216
    %1074 = vmatpush1.bf16.msra.mxu0 %v215
    %1075 = vmatprep.subr.bf16.mxu0 %v220
    %1076 = vmatpush1.bf16.msra.mxu0 %v219
    %1077 = vmatprep.subr.bf16.mxu0 0
    %1078 = vmatpush1.bf16.msra.mxu0 0
    %1079 = vmatprep.subr.bf16.mxu0 0
    %1080 = vmatpush1.bf16.msra.mxu0 0
    %1081 = vmatprep.subr.bf16.mxu0 0
    %1082 = vmatpush1.bf16.msra.mxu0 0
    %1083 = vmatprep.subr.bf16.mxu0 0
    %1084 = vmatpush1.bf16.msra.mxu0 0
    %1085 = vmatprep.subr.bf16.mxu0 0
    %1086 = vmatpush1.bf16.msra.mxu0 0
    %1087 = vmatprep.subr.bf16.mxu0 0
    %1088 = vmatpush1.bf16.msra.mxu0 0
    %1089 = vmatprep.subr.bf16.mxu0 0
    %1090 = vmatpush1.bf16.msra.mxu0 0
    %1091 = vmatprep.subr.bf16.mxu0 0
    %1092 = vmatpush1.bf16.msra.mxu0 0
    %1093 = vmatprep.mubr.bf16.mxu0 0
    %1094 = vmatmul.mubr.bf16.gmra.mrb[0].mxu0 %v1019
    %v1095 = vpop.f32.mrb[0].mxu0
    %v1096 = vadd.f32 0.0, %v1095
    %v1097 = vpop.f32.mrb[0].mxu0
    %v1098 = vadd.f32 0.0, %v1097
    %v1099 = vpop.f32.mrb[0].mxu0
    %v1100 = vpop.f32.mrb[0].mxu0
    %1101 = vdwg.mxu0
    %v1102 = vadd.f32 %v1015, %v1055
    %v1103 = vadd.f32 %v1016, %v1057
    %v1104 = vadd.f32 %v1017, %v1096
    %v1105 = vadd.f32 %v1018, %v1098
    %v1106 = vxor.u32 %v1102, 2147483648
    %v1107 = vmul.f32 %v1106, 1.442695
    %v1108 = vpow.pop %v1107
    %v1109 = vadd.f32 %v1108, 1.0
    %v1110 = vrcp.pop %v1109
    %v1111 = vmul.f32 1.0, %v1110
    %v1112 = vxor.u32 %v1103, 2147483648
    %v1113 = vmul.f32 %v1112, 1.442695
    %v1114 = vpow.pop %v1113
    %v1115 = vadd.f32 %v1114, 1.0
    %v1116 = vrcp.pop %v1115
    %v1117 = vmul.f32 1.0, %v1116
    %v1118 = vtanh.pop %v1104
    %v1119 = vxor.u32 %v1105, 2147483648
    %v1120 = vmul.f32 %v1119, 1.442695
    %v1121 = vpow.pop %v1120
    %v1122 = vadd.f32 %v1121, 1.0
    %v1123 = vrcp.pop %v1122
    %v1124 = vmul.f32 1.0, %v1123
    %v1125 = vmul.f32 %v1117, %v1011
    %v1126 = vmul.f32 %v1111, %v1118
    %v1127 = vadd.f32 %v1125, %v1126
    %v1128 = vtanh.pop %v1127
    %v1129 = vmul.f32 %v1124, %v1128
    %s1130 = sadd.s32 %s83, 6
    %v1131 = vstv %s1130
    %vm1132 = vcmp.lt.s32.totalorder %v1131, %v50
    %v1133 = vsel %vm1132, 1, 0
    %1134 = vset.pattern.permute.xlu0 0
    %1135 = vperm.xlu0 %1134, %v1133
    %v1136 = vpop.permute.xlu0 %1135
    %vm1137 = vcmp.eq.s32.totalorder %v1136, 1
    %v1138 = vsel %vm1137, %v1129, %v1010
    %v1139 = vsel %vm1137, %v1127, %v1011
    %s1140 = scalar_lea.vmem [#allocation3], 112
    %v1141 = vld [vmem:[%s1140] sm:$0xff]
    %v1142 = vld [vmem:[%s1140 + $0x8] sm:$0xff]
    %v1143 = vunpack.c.l.bf16 %v1141
    %v1144 = vunpack.c.h.bf16 %v1141
    %v1145 = vunpack.c.l.bf16 %v1142
    %v1146 = vunpack.c.h.bf16 %v1142
    %v1147 = vpack.c.bf16 %v1138, %v1138
    %1148 = vmatprep.subr.bf16.mxu0 %v190
    %1149 = vmatpush1.bf16.msra.mxu0 %v189
    %1150 = vmatprep.subr.bf16.mxu0 %v194
    %1151 = vmatpush1.bf16.msra.mxu0 %v193
    %1152 = vmatprep.subr.bf16.mxu0 %v198
    %1153 = vmatpush1.bf16.msra.mxu0 %v197
    %1154 = vmatprep.subr.bf16.mxu0 %v202
    %1155 = vmatpush1.bf16.msra.mxu0 %v201
    %1156 = vmatprep.subr.bf16.mxu0 %v206
    %1157 = vmatpush1.bf16.msra.mxu0 %v205
    %1158 = vmatprep.subr.bf16.mxu0 %v210
    %1159 = vmatpush1.bf16.msra.mxu0 %v209
    %1160 = vmatprep.subr.bf16.mxu0 %v214
    %1161 = vmatpush1.bf16.msra.mxu0 %v213
    %1162 = vmatprep.subr.bf16.mxu0 %v218
    %1163 = vmatpush1.bf16.msra.mxu0 %v217
    %1164 = vmatprep.subr.bf16.mxu0 0
    %1165 = vmatpush1.bf16.msra.mxu0 0
    %1166 = vmatprep.subr.bf16.mxu0 0
    %1167 = vmatpush1.bf16.msra.mxu0 0
    %1168 = vmatprep.subr.bf16.mxu0 0
    %1169 = vmatpush1.bf16.msra.mxu0 0
    %1170 = vmatprep.subr.bf16.mxu0 0
    %1171 = vmatpush1.bf16.msra.mxu0 0
    %1172 = vmatprep.subr.bf16.mxu0 0
    %1173 = vmatpush1.bf16.msra.mxu0 0
    %1174 = vmatprep.subr.bf16.mxu0 0
    %1175 = vmatpush1.bf16.msra.mxu0 0
    %1176 = vmatprep.subr.bf16.mxu0 0
    %1177 = vmatpush1.bf16.msra.mxu0 0
    %1178 = vmatprep.subr.bf16.mxu0 0
    %1179 = vmatpush1.bf16.msra.mxu0 0
    %1180 = vmatprep.mubr.bf16.mxu0 0
    %1181 = vmatmul.mubr.bf16.gmra.mrb[0].mxu0 %v1147
    %v1182 = vpop.f32.mrb[0].mxu0
    %v1183 = vadd.f32 0.0, %v1182
    %v1184 = vpop.f32.mrb[0].mxu0
    %v1185 = vadd.f32 0.0, %v1184
    %v1186 = vpop.f32.mrb[0].mxu0
    %v1187 = vpop.f32.mrb[0].mxu0
    %1188 = vdwg.mxu0
    %1189 = vmatprep.subr.bf16.mxu0 %v192
    %1190 = vmatpush1.bf16.msra.mxu0 %v191
    %1191 = vmatprep.subr.bf16.mxu0 %v196
    %1192 = vmatpush1.bf16.msra.mxu0 %v195
    %1193 = vmatprep.subr.bf16.mxu0 %v200
    %1194 = vmatpush1.bf16.msra.mxu0 %v199
    %1195 = vmatprep.subr.bf16.mxu0 %v204
    %1196 = vmatpush1.bf16.msra.mxu0 %v203
    %1197 = vmatprep.subr.bf16.mxu0 %v208
    %1198 = vmatpush1.bf16.msra.mxu0 %v207
    %1199 = vmatprep.subr.bf16.mxu0 %v212
    %1200 = vmatpush1.bf16.msra.mxu0 %v211
    %1201 = vmatprep.subr.bf16.mxu0 %v216
    %1202 = vmatpush1.bf16.msra.mxu0 %v215
    %1203 = vmatprep.subr.bf16.mxu0 %v220
    %1204 = vmatpush1.bf16.msra.mxu0 %v219
    %1205 = vmatprep.subr.bf16.mxu0 0
    %1206 = vmatpush1.bf16.msra.mxu0 0
    %1207 = vmatprep.subr.bf16.mxu0 0
    %1208 = vmatpush1.bf16.msra.mxu0 0
    %1209 = vmatprep.subr.bf16.mxu0 0
    %1210 = vmatpush1.bf16.msra.mxu0 0
    %1211 = vmatprep.subr.bf16.mxu0 0
    %1212 = vmatpush1.bf16.msra.mxu0 0
    %1213 = vmatprep.subr.bf16.mxu0 0
    %1214 = vmatpush1.bf16.msra.mxu0 0
    %1215 = vmatprep.subr.bf16.mxu0 0
    %1216 = vmatpush1.bf16.msra.mxu0 0
    %1217 = vmatprep.subr.bf16.mxu0 0
    %1218 = vmatpush1.bf16.msra.mxu0 0
    %1219 = vmatprep.subr.bf16.mxu0 0
    %1220 = vmatpush1.bf16.msra.mxu0 0
    %1221 = vmatprep.mubr.bf16.mxu0 0
    %1222 = vmatmul.mubr.bf16.gmra.mrb[0].mxu0 %v1147
    %v1223 = vpop.f32.mrb[0].mxu0
    %v1224 = vadd.f32 0.0, %v1223
    %v1225 = vpop.f32.mrb[0].mxu0
    %v1226 = vadd.f32 0.0, %v1225
    %v1227 = vpop.f32.mrb[0].mxu0
    %v1228 = vpop.f32.mrb[0].mxu0
    %1229 = vdwg.mxu0
    %v1230 = vadd.f32 %v1143, %v1183
    %v1231 = vadd.f32 %v1144, %v1185
    %v1232 = vadd.f32 %v1145, %v1224
    %v1233 = vadd.f32 %v1146, %v1226
    %v1234 = vxor.u32 %v1230, 2147483648
    %v1235 = vmul.f32 %v1234, 1.442695
    %v1236 = vpow.pop %v1235
    %v1237 = vadd.f32 %v1236, 1.0
    %v1238 = vrcp.pop %v1237
    %v1239 = vmul.f32 1.0, %v1238
    %v1240 = vxor.u32 %v1231, 2147483648
    %v1241 = vmul.f32 %v1240, 1.442695
    %v1242 = vpow.pop %v1241
    %v1243 = vadd.f32 %v1242, 1.0
    %v1244 = vrcp.pop %v1243
    %v1245 = vmul.f32 1.0, %v1244
    %v1246 = vtanh.pop %v1232
    %v1247 = vxor.u32 %v1233, 2147483648
    %v1248 = vmul.f32 %v1247, 1.442695
    %v1249 = vpow.pop %v1248
    %v1250 = vadd.f32 %v1249, 1.0
    %v1251 = vrcp.pop %v1250
    %v1252 = vmul.f32 1.0, %v1251
    %v1253 = vmul.f32 %v1245, %v1139
    %v1254 = vmul.f32 %v1239, %v1246
    %v1255 = vadd.f32 %v1253, %v1254
    %v1256 = vtanh.pop %v1255
    %v1257 = vmul.f32 %v1252, %v1256
    %s1258 = sadd.s32 %s83, 7
    %v1259 = vstv %s1258
    %vm1260 = vcmp.lt.s32.totalorder %v1259, %v50
    %v1261 = vsel %vm1260, 1, 0
    %1262 = vset.pattern.permute.xlu0 0
    %1263 = vperm.xlu0 %1262, %v1261
    %v1264 = vpop.permute.xlu0 %1263
    %vm1265 = vcmp.eq.s32.totalorder %v1264, 1
    %v1266 = vsel %vm1265, %v1257, %v1138
    %v1267 = vsel %vm1265, %v1255, %v1139
    %1268 = vst [vmem:[#allocation8] sm:$0xff] %v1266
    %1269 = vst [vmem:[#allocation2] sm:$0xff] %v1267
    // Predicated region
    $region26: #{tpu_custom_call.1} parent=1 // pred_check
      _
    $region27: #{tpu_custom_call.1} parent=1 // pred_check_branch
      %1271 = sbr.rel (0) target = $region29
    $region28: #{tpu_custom_call.1} parent=1 // pred_region
      %s1273 = ssub.s32 128, 128
      %1274 = vsyncadd [#allocation5], %s1273
      %s1276 = sshll.u32 [#allocation8], 4
      %s1277 = int_to_ptr.vmem [resolvable:$true] %s1276
      %1279 = dma.vmem_to_hbm [thread:$0]  %s1277, 128, %s3, [#allocation5]
    $region29: #{tpu_custom_call.1} parent=1 // pred_fallthru
      _
    // Predicated region
    $region30: #{tpu_custom_call.1} parent=1 // pred_check
      _
    $region31: #{tpu_custom_call.1} parent=1 // pred_check_branch
      %1281 = sbr.rel (0) target = $region33
    $region32: #{tpu_custom_call.1} parent=1 // pred_region
      %1282 = dma.done [#allocation5], 128
    $region33: #{tpu_custom_call.1} parent=1 // pred_fallthru
      _
    %1283 = vsyncpa [#allocation4], 1
    %1284 = vsyncpa [#allocation7], 1
    %1285 = vsyncpa [#allocation5], 1

</llo_original>
